<compile_context>
chip_gen: v7x
topology: tpu7x:2x2x1
jax: 0.10.0
libtpu: 0.0.40
codegen_flags: <defaults>
</compile_context>

<pallas_src>
import jax
import jax.numpy as jnp
import numpy as np
from jax.experimental import pallas as pl
from jax.experimental.pallas import tpu as pltpu


def _phase_weight(w):
    """Phase-merged weight (3, 3, Cin, 4*Cout) from torch (Cin, Cout, kH, kW).

    For output phase (py, px) and 3x3 window position (wy, wx) of the padded
    input, the contributing transposed-conv tap is:
        phase 0: window 0 -> tap 3, window 1 -> tap 1   (others unused)
        phase 1: window 1 -> tap 2, window 2 -> tap 0   (others unused)
    Output columns are ordered (py, px, co) so the packed store reshapes for
    free into the interleaved (2H, 2W, C) output.
    """
    c_in, c_out = w.shape[0], w.shape[1]
    taps = ({0: 3, 1: 1}, {1: 2, 2: 0})  # taps[phase][window_idx] = kernel tap
    zeros = jnp.zeros((c_in, c_out), w.dtype)
    rows = []
    for wy in range(3):
        cols = []
        for wx in range(3):
            blocks = []
            for py in (0, 1):
                for px in (0, 1):
                    ky = taps[py].get(wy)
                    kx = taps[px].get(wx)
                    blocks.append(zeros if (ky is None or kx is None)
                                  else w[:, :, ky, kx])
            cols.append(jnp.concatenate(blocks, axis=1))  # (Cin, 4*Cout)
        rows.append(jnp.stack(cols, axis=0))               # (3, Cin, 4*Cout)
    return jnp.stack(rows, axis=0)                          # (3, 3, Cin, 4*Cout)


def _upsample_kernel(x_ref, top_ref, bot_ref, w_ref, b_ref, out_ref, xpad_ref):
    # x_ref:   (1, S, W, C)   bf16 input strip (pipelined)
    # top_ref: (1, 1, W, C)   bf16 row above the strip (zeros at image top)
    # bot_ref: (1, 1, W, C)   bf16 row below the strip (zeros at image bottom)
    # w_ref:   (9C, 4C)       bf16 phase-merged weights (resident, im2col order)
    # b_ref:   (1, 4C)        f32 bias tiled per phase
    # out_ref: (S, 2, W, 2C)  phase-packed output block
    # xpad_ref:(S+2, W+2, C)  bf16 VMEM scratch: strip with 1-pixel halo
    S = out_ref.shape[0]
    W = out_ref.shape[2]
    C = xpad_ref.shape[2]

    # ---- assemble the halo'd strip in VMEM scratch (every byte rewritten
    # every step -> megacore / grid-split safe) -------------------------------
    xpad_ref[:, 0:1, :] = jnp.zeros((S + 2, 1, C), xpad_ref.dtype)       # left
    xpad_ref[:, W + 1:W + 2, :] = jnp.zeros((S + 2, 1, C), xpad_ref.dtype)  # right
    xpad_ref[0:1, 1:W + 1, :] = top_ref[0]                               # top halo
    xpad_ref[S + 1:S + 2, 1:W + 1, :] = bot_ref[0]                       # bottom halo
    xpad_ref[1:S + 1, 1:W + 1, :] = x_ref[0]                             # interior

    xpad = xpad_ref[...]                                                 # (S+2, W+2, C)

    # ---- im2col: concatenate the 9 shifted windows along the contraction
    # axis -> ONE (S*W, 9C) x (9C, 4C) MXU matmul, f32 accumulation -----------
    taps = [xpad[wy:wy + S, wx:wx + W, :]
            for wy in range(3) for wx in range(3)]
    patch = jnp.concatenate(taps, axis=-1).reshape(S * W, 9 * C)         # bf16
    acc = jnp.dot(patch, w_ref[...], preferred_element_type=jnp.float32)
    acc = acc + b_ref[...]                                               # single epilogue pass

    # ---- phase-packed store: out[r, py, c, px*C + co] == y[2r+py, 2c+px, co]
    C2 = 2 * C
    out_ref[:, 0, :, :] = acc[:, :C2].reshape(S, W, C2).astype(out_ref.dtype)
    out_ref[:, 1, :, :] = acc[:, C2:].reshape(S, W, C2).astype(out_ref.dtype)


def _pick_strip_rows(H):
    # Prefer ~8-row strips (MXU M = 8*W); fall back to any divisor, else full H.
    for s in (8, 16, 4, 32, 2):
        if H > s and H % s == 0:
            return s
    return H


def upsample(x_nchw, w, b):
    """Forward of Upsample: ConvTranspose2d(dim, dim, 4, stride=2, padding=1).

    x_nchw: (N, C, H, W); w: (C, C, 4, 4) torch ConvTranspose2d layout; b: (C,).
    Returns (N, C, 2H, 2W).
    """
    N, C, H, W = x_nchw.shape
    out_dtype = x_nchw.dtype

    # NCHW -> NHWC, stream activations to the kernel in bf16.
    x = jnp.transpose(x_nchw, (0, 2, 3, 1)).astype(jnp.bfloat16)          # (N,H,W,C)

    S = _pick_strip_rows(H)
    n_strips = H // S

    # 1-row top/bottom halos per strip, gathered once in the wrapper (tiny):
    #   top[n, s] = x[n, s*S - 1]   (zeros for s == 0)
    #   bot[n, s] = x[n, (s+1)*S]   (zeros for s == n_strips-1)
    zero_row = jnp.zeros((N, 1, W, C), jnp.bfloat16)
    top = jnp.concatenate([zero_row, x[:, S - 1:H - 1:S]], axis=1)        # (N,n_strips,W,C)
    bot = jnp.concatenate([x[:, S:H:S], zero_row], axis=1)                # (N,n_strips,W,C)

    # Phase-merged weight in im2col order (9C, 4C), bf16; bias tiled per phase.
    w9 = _phase_weight(w).reshape(9 * C, 4 * C).astype(jnp.bfloat16)
    b4 = jnp.tile(b, 4)[None, :].astype(jnp.float32)                      # (1, 4C)

    # Per-step VMEM budget (double-buffered blocks + resident weight + scratch
    # + im2col patch + f32 accumulator); sized so it also fits v7x's 64 MiB.
    out_bytes = S * 2 * W * 2 * C * jnp.dtype(out_dtype).itemsize
    est = (2 * out_bytes                               # output block x2
           + 2 * S * W * C * 2 + 4 * W * C * 2         # input strip + halos x2
           + 9 * C * 4 * C * 2 + 4 * C * 4             # weights + bias
           + (S + 2) * (W + 2) * C * 2                 # halo scratch
           + S * W * 9 * C * 2                         # im2col patch
           + S * W * 4 * C * 4)                        # f32 accumulator
    vmem_limit = int(min(max(32 * 2**20, 2 * est), 64 * 2**20))

    packed = pl.pallas_call(
        _upsample_kernel,
        out_shape=jax.ShapeDtypeStruct((N * H, 2, W, 2 * C), out_dtype),
        grid_spec=pltpu.PrefetchScalarGridSpec(
            num_scalar_prefetch=0,
            grid=(N, n_strips),
            in_specs=[
                pl.BlockSpec((1, S, W, C), lambda n, s: (n, s, 0, 0)),
                pl.BlockSpec((1, 1, W, C), lambda n, s: (n, s, 0, 0)),
                pl.BlockSpec((1, 1, W, C), lambda n, s: (n, s, 0, 0)),
                pl.BlockSpec((9 * C, 4 * C), lambda n, s: (0, 0)),
                pl.BlockSpec((1, 4 * C), lambda n, s: (0, 0)),
            ],
            out_specs=pl.BlockSpec((S, 2, W, 2 * C),
                                   lambda n, s: (n * n_strips + s, 0, 0, 0)),
            scratch_shapes=[pltpu.VMEM((S + 2, W + 2, C), jnp.bfloat16)],
        ),
        compiler_params=pltpu.CompilerParams(
            dimension_semantics=("parallel", "parallel"),
            vmem_limit_bytes=vmem_limit),
    )(x, top, bot, w9, b4)

    # (N*H, 2, W, 2C) -> (N, 2H, 2W, C) is a pure row-major reshape (free):
    # flat((n*H+r, py, c, px*C+co)) == flat((n, 2r+py, 2c+px, co)).
    y = packed.reshape(N, 2 * H, 2 * W, C)
    return jnp.transpose(y, (0, 3, 1, 2))                                 # NHWC -> NCHW


# ---------------- pure-JAX reference (for correctness check) ----------------
def upsample_ref(x_nchw, w, b):
    # ConvTranspose2d(stride=2, pad=1, k=4) == conv of the lhs-dilated input
    # (dilation 2, padding k-1-p = 2) with the spatially-flipped kernel.
    x = jnp.transpose(x_nchw, (0, 2, 3, 1))
    wc = jnp.transpose(w[:, :, ::-1, ::-1], (2, 3, 0, 1))  # HWIO, flipped
    y = jax.lax.conv_general_dilated(
        x, wc, window_strides=(1, 1), padding=((2, 2), (2, 2)),
        lhs_dilation=(2, 2), dimension_numbers=("NHWC", "HWIO", "NHWC"))
    y = y + b[None, None, None, :]
    return jnp.transpose(y, (0, 3, 1, 2))


if __name__ == "__main__":
    key = jax.random.PRNGKey(0)
    kx, kw, kb = jax.random.split(key, 3)

    N, dim, H, W = 2, 64, 16, 16
    x = jax.random.normal(kx, (N, dim, H, W), jnp.float32)        # NCHW
    # torch ConvTranspose2d weight layout: (in_channels, out_channels, kH, kW)
    w = jax.random.normal(kw, (dim, dim, 4, 4), jnp.float32) * 0.05
    b = jax.random.normal(kb, (dim,), jnp.float32) * 0.05

    out = jax.block_until_ready(jax.jit(upsample)(x, w, b))
    assert out.shape == (N, dim, 2 * H, 2 * W)

    ref = jax.block_until_ready(upsample_ref(x, w, b))
    np.testing.assert_allclose(np.asarray(out), np.asarray(ref),
                               atol=2e-2, rtol=2e-2)
    print("KERNEL_OK")
</pallas_src>

<mosaic_0001>
module attributes {stable_mosaic.version = 11 : i64} {
  func.func @_upsample_kernel(%arg0: i32, %arg1: i32, %arg2: memref<1x8x16x64xbf16, #tpu.memory_space<vmem>>, %arg3: memref<1x1x16x64xbf16, #tpu.memory_space<vmem>>, %arg4: memref<1x1x16x64xbf16, #tpu.memory_space<vmem>>, %arg5: memref<576x256xbf16, #tpu.memory_space<vmem>>, %arg6: memref<1x256xf32, #tpu.memory_space<vmem>>, %arg7: memref<8x2x16x128xf32, #tpu.memory_space<vmem>>, %arg8: memref<10x18x64xbf16, #tpu.memory_space<vmem>>) attributes {dimension_semantics = [#tpu.dimension_semantics<parallel>, #tpu.dimension_semantics<parallel>], iteration_bounds = array<i64: 2, 2>, scalar_prefetch = 0 : i64, scratch_operands = 1 : i64, tpu.core_type = #tpu.core_type<tc>, window_params = [{transform_indices = @transform_0, window_bounds = array<i64: 1, 8, 16, 64>}, {transform_indices = @transform_1, window_bounds = array<i64: 1, 1, 16, 64>}, {transform_indices = @transform_2, window_bounds = array<i64: 1, 1, 16, 64>}, {pipeline_mode = #tpu.pipeline_mode<synchronous>, transform_indices = @transform_3, window_bounds = array<i64: 576, 256>}, {pipeline_mode = #tpu.pipeline_mode<synchronous>, transform_indices = @transform_4, window_bounds = array<i64: 1, 256>}, {transform_indices = @transform_5, window_bounds = array<i64: 8, 2, 16, 128>}]} {
    %cst = arith.constant 0.000000e+00 : bf16
    %0 = vector.broadcast %cst : bf16 to vector<10x1x64xbf16>
    %c0 = arith.constant 0 : index
    %c0_0 = arith.constant 0 : index
    %c0_1 = arith.constant 0 : index
    %1 = vector.load %arg8[%c0, %c0_0, %c0_1] : memref<10x18x64xbf16, #tpu.memory_space<vmem>>, vector<10x1x64xbf16>
    tpu.vector_store %arg8[%c0, %c0_0, %c0_1], %0 {strides = array<i32>} : memref<10x18x64xbf16, #tpu.memory_space<vmem>>, vector<10x1x64xbf16>,
    %cst_2 = arith.constant 0.000000e+00 : bf16
    %2 = vector.broadcast %cst_2 : bf16 to vector<10x1x64xbf16>
    %c0_3 = arith.constant 0 : index
    %c17 = arith.constant 17 : index
    %c0_4 = arith.constant 0 : index
    %3 = vector.load %arg8[%c0_3, %c17, %c0_4] : memref<10x18x64xbf16, #tpu.memory_space<vmem>>, vector<10x1x64xbf16>
    tpu.vector_store %arg8[%c0_3, %c17, %c0_4], %2 {strides = array<i32>} : memref<10x18x64xbf16, #tpu.memory_space<vmem>>, vector<10x1x64xbf16>,
    %c0_5 = arith.constant 0 : index
    %c0_6 = arith.constant 0 : index
    %c0_7 = arith.constant 0 : index
    %c0_8 = arith.constant 0 : index
    %4 = vector.load %arg3[%c0_5, %c0_6, %c0_7, %c0_8] : memref<1x1x16x64xbf16, #tpu.memory_space<vmem>>, vector<1x1x16x64xbf16>
    %5 = vector.shape_cast %4 : vector<1x1x16x64xbf16> to vector<1x16x64xbf16>
    %c0_9 = arith.constant 0 : index
    %c1 = arith.constant 1 : index
    %c0_10 = arith.constant 0 : index
    %6 = vector.load %arg8[%c0_9, %c1, %c0_10] : memref<10x18x64xbf16, #tpu.memory_space<vmem>>, vector<1x16x64xbf16>
    tpu.vector_store %arg8[%c0_9, %c1, %c0_10], %5 {strides = array<i32>} : memref<10x18x64xbf16, #tpu.memory_space<vmem>>, vector<1x16x64xbf16>,
    %c0_11 = arith.constant 0 : index
    %c0_12 = arith.constant 0 : index
    %c0_13 = arith.constant 0 : index
    %c0_14 = arith.constant 0 : index
    %7 = vector.load %arg4[%c0_11, %c0_12, %c0_13, %c0_14] : memref<1x1x16x64xbf16, #tpu.memory_space<vmem>>, vector<1x1x16x64xbf16>
    %8 = vector.shape_cast %7 : vector<1x1x16x64xbf16> to vector<1x16x64xbf16>
    %c9 = arith.constant 9 : index
    %c1_15 = arith.constant 1 : index
    %c0_16 = arith.constant 0 : index
    %9 = vector.load %arg8[%c9, %c1_15, %c0_16] : memref<10x18x64xbf16, #tpu.memory_space<vmem>>, vector<1x16x64xbf16>
    tpu.vector_store %arg8[%c9, %c1_15, %c0_16], %8 {strides = array<i32>} : memref<10x18x64xbf16, #tpu.memory_space<vmem>>, vector<1x16x64xbf16>,
    %c0_17 = arith.constant 0 : index
    %c0_18 = arith.constant 0 : index
    %c0_19 = arith.constant 0 : index
    %c0_20 = arith.constant 0 : index
    %10 = vector.load %arg2[%c0_17, %c0_18, %c0_19, %c0_20] : memref<1x8x16x64xbf16, #tpu.memory_space<vmem>>, vector<1x8x16x64xbf16>
    %11 = vector.shape_cast %10 : vector<1x8x16x64xbf16> to vector<8x16x64xbf16>
    %c1_21 = arith.constant 1 : index
    %c1_22 = arith.constant 1 : index
    %c0_23 = arith.constant 0 : index
    %12 = vector.load %arg8[%c1_21, %c1_22, %c0_23] : memref<10x18x64xbf16, #tpu.memory_space<vmem>>, vector<8x16x64xbf16>
    tpu.vector_store %arg8[%c1_21, %c1_22, %c0_23], %11 {strides = array<i32>} : memref<10x18x64xbf16, #tpu.memory_space<vmem>>, vector<8x16x64xbf16>,
    %c0_24 = arith.constant 0 : index
    %c0_25 = arith.constant 0 : index
    %c0_26 = arith.constant 0 : index
    %13 = vector.load %arg8[%c0_24, %c0_25, %c0_26] : memref<10x18x64xbf16, #tpu.memory_space<vmem>>, vector<10x18x64xbf16>
    %14 = vector.extract_strided_slice %13 {offsets = [0, 0, 0], sizes = [8, 16, 64], strides = [1, 1, 1]} : vector<10x18x64xbf16> to vector<8x16x64xbf16>
    %15 = vector.extract_strided_slice %13 {offsets = [0, 1, 0], sizes = [8, 16, 64], strides = [1, 1, 1]} : vector<10x18x64xbf16> to vector<8x16x64xbf16>
    %16 = vector.extract_strided_slice %13 {offsets = [0, 2, 0], sizes = [8, 16, 64], strides = [1, 1, 1]} : vector<10x18x64xbf16> to vector<8x16x64xbf16>
    %17 = vector.extract_strided_slice %13 {offsets = [1, 0, 0], sizes = [8, 16, 64], strides = [1, 1, 1]} : vector<10x18x64xbf16> to vector<8x16x64xbf16>
    %18 = vector.extract_strided_slice %13 {offsets = [1, 1, 0], sizes = [8, 16, 64], strides = [1, 1, 1]} : vector<10x18x64xbf16> to vector<8x16x64xbf16>
    %19 = vector.extract_strided_slice %13 {offsets = [1, 2, 0], sizes = [8, 16, 64], strides = [1, 1, 1]} : vector<10x18x64xbf16> to vector<8x16x64xbf16>
    %20 = vector.extract_strided_slice %13 {offsets = [2, 0, 0], sizes = [8, 16, 64], strides = [1, 1, 1]} : vector<10x18x64xbf16> to vector<8x16x64xbf16>
    %21 = vector.extract_strided_slice %13 {offsets = [2, 1, 0], sizes = [8, 16, 64], strides = [1, 1, 1]} : vector<10x18x64xbf16> to vector<8x16x64xbf16>
    %22 = vector.extract_strided_slice %13 {offsets = [2, 2, 0], sizes = [8, 16, 64], strides = [1, 1, 1]} : vector<10x18x64xbf16> to vector<8x16x64xbf16>
    %23 = tpu.concatenate %14, %15, %16, %17, %18, %19, %20, %21, %22 in 2 : vector<8x16x64xbf16>, vector<8x16x64xbf16>, vector<8x16x64xbf16>, vector<8x16x64xbf16>, vector<8x16x64xbf16>, vector<8x16x64xbf16>, vector<8x16x64xbf16>, vector<8x16x64xbf16>, vector<8x16x64xbf16> -> vector<8x16x576xbf16>
    %24 = vector.shape_cast %23 : vector<8x16x576xbf16> to vector<128x576xbf16>
    %c0_27 = arith.constant 0 : index
    %c0_28 = arith.constant 0 : index
    %25 = vector.load %arg5[%c0_27, %c0_28] : memref<576x256xbf16, #tpu.memory_space<vmem>>, vector<576x256xbf16>
    %cst_29 = arith.constant dense<0.000000e+00> : vector<128x256xf32>
    %26 = tpu.matmul %24, %25, %cst_29 {dimension_numbers = #tpu.dot_dimension_numbers<[1], [0], [0], [1], [0, 0, 1, 1], [], []>} : vector<128x576xbf16>, vector<576x256xbf16>, vector<128x256xf32> -> vector<128x256xf32>
    %c0_30 = arith.constant 0 : index
    %c0_31 = arith.constant 0 : index
    %27 = vector.load %arg6[%c0_30, %c0_31] : memref<1x256xf32, #tpu.memory_space<vmem>>, vector<1x256xf32>
    %28 = vector.broadcast %27 : vector<1x256xf32> to vector<128x256xf32>
    %29 = arith.addf %26, %28 : vector<128x256xf32>
    %30 = vector.extract_strided_slice %29 {offsets = [0, 0], sizes = [128, 128], strides = [1, 1]} : vector<128x256xf32> to vector<128x128xf32>
    %31 = vector.shape_cast %30 : vector<128x128xf32> to vector<8x16x128xf32>
    %c0_32 = arith.constant 0 : index
    %c0_33 = arith.constant 0 : index
    %c0_34 = arith.constant 0 : index
    %c0_35 = arith.constant 0 : index
    %32 = vector.load %arg7[%c0_32, %c0_33, %c0_34, %c0_35] : memref<8x2x16x128xf32, #tpu.memory_space<vmem>>, vector<8x1x16x128xf32>
    %33 = vector.shape_cast %32 : vector<8x1x16x128xf32> to vector<8x16x128xf32>
    %34 = vector.shape_cast %31 : vector<8x16x128xf32> to vector<8x1x16x128xf32>
    tpu.vector_store %arg7[%c0_32, %c0_33, %c0_34, %c0_35], %34 {strides = array<i32>} : memref<8x2x16x128xf32, #tpu.memory_space<vmem>>, vector<8x1x16x128xf32>,
    %35 = vector.extract_strided_slice %29 {offsets = [0, 128], sizes = [128, 128], strides = [1, 1]} : vector<128x256xf32> to vector<128x128xf32>
    %36 = vector.shape_cast %35 : vector<128x128xf32> to vector<8x16x128xf32>
    %c0_36 = arith.constant 0 : index
    %c1_37 = arith.constant 1 : index
    %c0_38 = arith.constant 0 : index
    %c0_39 = arith.constant 0 : index
    %37 = vector.load %arg7[%c0_36, %c1_37, %c0_38, %c0_39] : memref<8x2x16x128xf32, #tpu.memory_space<vmem>>, vector<8x1x16x128xf32>
    %38 = vector.shape_cast %37 : vector<8x1x16x128xf32> to vector<8x16x128xf32>
    %39 = vector.shape_cast %36 : vector<8x16x128xf32> to vector<8x1x16x128xf32>
    tpu.vector_store %arg7[%c0_36, %c1_37, %c0_38, %c0_39], %39 {strides = array<i32>} : memref<8x2x16x128xf32, #tpu.memory_space<vmem>>, vector<8x1x16x128xf32>,
    return
  }
  func.func @transform_0(%arg0: i32, %arg1: i32) -> (i32, i32, i32, i32) {
    %c0_i32 = arith.constant 0 : i32
    %c0_i32_0 = arith.constant 0 : i32
    %c0_i32_1 = arith.constant 0 : i32
    return %arg0, %arg1, %c0_i32, %c0_i32_0 : i32, i32, i32, i32
  }
  func.func @transform_1(%arg0: i32, %arg1: i32) -> (i32, i32, i32, i32) {
    %c0_i32 = arith.constant 0 : i32
    %c0_i32_0 = arith.constant 0 : i32
    %c0_i32_1 = arith.constant 0 : i32
    return %arg0, %arg1, %c0_i32, %c0_i32_0 : i32, i32, i32, i32
  }
  func.func @transform_2(%arg0: i32, %arg1: i32) -> (i32, i32, i32, i32) {
    %c0_i32 = arith.constant 0 : i32
    %c0_i32_0 = arith.constant 0 : i32
    %c0_i32_1 = arith.constant 0 : i32
    return %arg0, %arg1, %c0_i32, %c0_i32_0 : i32, i32, i32, i32
  }
  func.func @transform_3(%arg0: i32, %arg1: i32) -> (i32, i32) {
    %c0_i32 = arith.constant 0 : i32
    %c0_i32_0 = arith.constant 0 : i32
    %c0_i32_1 = arith.constant 0 : i32
    return %c0_i32, %c0_i32_0 : i32, i32
  }
  func.func @transform_4(%arg0: i32, %arg1: i32) -> (i32, i32) {
    %c0_i32 = arith.constant 0 : i32
    %c0_i32_0 = arith.constant 0 : i32
    %c0_i32_1 = arith.constant 0 : i32
    return %c0_i32, %c0_i32_0 : i32, i32
  }
  func.func @transform_5(%arg0: i32, %arg1: i32) -> (i32, i32, i32, i32) {
    %c2_i32 = arith.constant 2 : i32
    %0 = arith.muli %arg0, %c2_i32 : i32
    %1 = arith.addi %0, %arg1 : i32
    %c0_i32 = arith.constant 0 : i32
    %c0_i32_0 = arith.constant 0 : i32
    %c0_i32_1 = arith.constant 0 : i32
    %c0_i32_2 = arith.constant 0 : i32
    return %1, %c0_i32, %c0_i32_0, %c0_i32_1 : i32, i32, i32, i32
  }
}

</mosaic_0001>

<llo_original>
// kernel: tile.8
$region0: #{tile.8}
  #allocation0 [shape = 's32[1]{0}', space=sflag, size = 0x4, scoped, tag = 'scoped memory for tile.8']
  %s0 = inlined_call_operand.vmem [shape: f32[64], index: 0, kind: input, shape index: {}]
  %s1 = inlined_call_operand.vmem [shape: f32[4,64], index: 1, kind: output, shape index: {}]
  // Predicated region
  $region2: #{tile.8} parent=0 // pred_check
    _
  $region3: #{tile.8} parent=0 // pred_check_branch
    %3 = sbr.rel (0) target = $region5
  $region4: #{tile.8} parent=0 // pred_region
    _
  $region5: #{tile.8} parent=0 // pred_fallthru
    _
  %v4 = vld [vmem:[%s0] ss:$0 sm:$0xff]
  %5 = vst [vmem:[%s1] sm:$0xf] %v4

// kernel: tile.9
$region0: #{tile.9}
  %s0 = inlined_call_operand.vmem [shape: f32[4,64], index: 0, kind: input, shape index: {}]
  %s1 = inlined_call_operand.vmem [shape: f32[1,256], index: 1, kind: output, shape index: {}]
  $region1: #{tile.9} parent=0
    #allocation0 [shape = 'u8[8192]{0}', space=vmem, size = 0x2000, scoped, tag = 'scoped mem for output reshape']
    #allocation1 [shape = 'u8[4096]{0}', space=vmem, size = 0x1000, scoped, tag = 'scoped mem for input reshape']
    %s3 = sshllo.u32 0, 4
    %v4 = vld [vmem:[%s0] sm:%s3]
    %5 = vst [vmem:[#allocation1] sm:%s3] %v4
    %s6 = smov 3
    %v7 = vld [vmem:[#allocation1] ss:$2 sm:%s6]
    %vm8 = vcmask 523264
    %9 = vst.msk [vmem:[#allocation0] ss:$8 sm:$0x3] %vm8, %v7
    %s10 = scalar_lea.vmem [#allocation1], 1
    %s11 = smov 3
    %v12 = vld [vmem:[%s10] ss:$2 sm:%s11]
    %13 = vrot.lane.b32.xlu0 %v12, 64
    %v14 = vpop.permute.xlu0 %13
    %vm15 = vcmask 1048064
    %16 = vst.msk [vmem:[#allocation0] ss:$8 sm:$0x3] %vm15, %v14
    %s18 = sshllo.u32 0, 1
    %v20 = vld [vmem:[#allocation0] sm:%s18]
    %s21 = sshllo.u32 0, 1
    %22 = vst [vmem:[%s1] sm:%s21] %v20
    %s23 = scalar_lea.vmem [#allocation0], 8
    %v24 = vld [vmem:[%s23] sm:%s18]
    %s25 = sshllo.u32 0, 1
    %s26 = scalar_lea.vmem %s1, 1
    %27 = vst [vmem:[%s26] sm:%s25] %v24

// kernel: upsample.1
$region0: #{upsample.1}
  #allocation0 [shape = 'u32[]', space=smem, size = 0x4, offset = 0x4, fixed_abs, tag = 'smem constant byte address 0x4 - core index']
  #allocation1 [shape = 'u32[144,128]{1,0:T(1,128)}', space=vmem, size = 0x12000, scoped, tag = 'internal scratch']
  #allocation2 [shape = 'bf16[10,18,64]{2,1,0:T(8,128)(2,1)}', space=vmem, size = 0xf000, scoped, tag = 'scratch operand']
  %s0 = inlined_call_operand.vmem [shape: bf16[2,16,16,64], index: 0, kind: input, shape index: {}]
  %s1 = inlined_call_operand.vmem [shape: bf16[2,2,16,64], index: 1, kind: input, shape index: {}]
  %s2 = inlined_call_operand.vmem [shape: bf16[2,2,16,64], index: 2, kind: input, shape index: {}]
  %s3 = inlined_call_operand.vmem [shape: bf16[576,256], index: 3, kind: input, shape index: {}]
  %s4 = inlined_call_operand.vmem [shape: f32[1,256], index: 4, kind: input, shape index: {}]
  %s5 = inlined_call_operand.vmem [shape: f32[32,2,16,128], index: 5, kind: output, shape index: {}]
  %s6 = sld [smem:[#allocation0]]
  $region53: #{upsample.1} parent=0
    _
  %s8 = ssub.s32 1, %s6
  %s9 = scalar_select 0, %s8, %s6
  loop: start=0, step=1, limit=6
  $region2: #{upsample.1} parent=0 // loop_pre_header
    _
  $region3: #{upsample.1} parent=0 // loop_header
    %s11 = sphi 0, %s15
    %p12 = scmp.ge.s32.totalorder %s11, 6
    %s18 = sphi 0, %s30
    %s19 = sphi 0, %s26
    %s20 = sphi 0, %s18
    %s21 = sphi 0, %s19
    %s22 = sphi 0, %s20
    %s23 = sphi 0, %s21
    %s35 = sphi 0, %s37
    %s38 = sphi 0, %s35
    %s39 = sphi 0, %s38
    %s55 = sphi 0, %s39
    %s63 = sphi 0, %s65
    %s66 = sphi 0, %s63
    %s67 = sphi 0, %s66
    %s83 = sphi 0, %s67
    %s91 = sphi 0, %s93
    %s94 = sphi 0, %s91
    %s95 = sphi 0, %s94
    %s111 = sphi 0, %s95
    %s115 = sphi 0, %s115
    %s117 = sphi 0, %s115
    %s118 = sphi 0, %s117
    %s132 = sphi 0, %s118
    %s136 = sphi 0, %s136
    %s138 = sphi 0, %s136
    %s139 = sphi 0, %s138
    %s153 = sphi 0, %s139
    %s163 = sphi 0, %s165
    %s166 = sphi 0, %s163
    %s167 = sphi 0, %s166
    %s183 = sphi 0, %s167
  $region4: #{upsample.1} parent=0 // loop_header_branch
    %14 = sbr.rel (%p12) target = $region8
  $region5: #{upsample.1} parent=0 // loop_body
    %s16 = ssub.s32 %s11, 1
    %s17 = ssub.s32 %s11, 2
    %s24 = sadd.s32 1, %s19
    %p25 = scmp.ge.s32.totalorder %s24, 2
    %s26 = scalar_select %p25, 0, %s24
    %s27 = sadd.s32 1, %s18
    %s28 = scalar_select %p25, %s27, %s18
    %p29 = scmp.ge.s32.totalorder %s28, 2
    %s30 = scalar_select %p29, 0, %s28
    %s31 = ssub.s32 %s18, %s30
    %s32 = ssub.s32 %s19, %s26
    %s33 = sor.u32 %s31, %s32
    %p34 = scmp.eq.s32.totalorder %s33, 0
    %s36 = sadd.s32 %s35, 1
    %s37 = scalar_select %p34, %s35, %s36
    %p40 = pneg %p34
    %p41 = scmp.eq.s32.totalorder %s11, 3
    %p42 = por %p40, %p41
    %p43 = scmp.ne.s32.totalorder %s35, %s38
    %p44 = scmp.eq.s32.totalorder %s11, 0
    %p45 = por %p43, %p44
    %p46 = scmp.ne.s32.totalorder %s35, %s38
    %p47 = scmp.eq.s32.totalorder %s16, 3
    %p48 = por %p46, %p47
    %p49 = scmp.ne.s32.totalorder %s38, %s39
    %p50 = scmp.eq.s32.totalorder %s16, 0
    %p51 = por %p49, %p50
    %p52 = scmp.ne.s32.totalorder %s38, %s39
    %p53 = scmp.eq.s32.totalorder %s17, 3
    %p54 = por %p52, %p53
    %p56 = scmp.ne.s32.totalorder %s39, %s55
    %p57 = scmp.eq.s32.totalorder %s17, 0
    %p58 = por %p56, %p57
    %s59 = ssub.s32 %s18, %s30
    %s60 = ssub.s32 %s19, %s26
    %s61 = sor.u32 %s59, %s60
    %p62 = scmp.eq.s32.totalorder %s61, 0
    %s64 = sadd.s32 %s63, 1
    %s65 = scalar_select %p62, %s63, %s64
    %p68 = pneg %p62
    %p69 = scmp.eq.s32.totalorder %s11, 3
    %p70 = por %p68, %p69
    %p71 = scmp.ne.s32.totalorder %s63, %s66
    %p72 = scmp.eq.s32.totalorder %s11, 0
    %p73 = por %p71, %p72
    %p74 = scmp.ne.s32.totalorder %s63, %s66
    %p75 = scmp.eq.s32.totalorder %s16, 3
    %p76 = por %p74, %p75
    %p77 = scmp.ne.s32.totalorder %s66, %s67
    %p78 = scmp.eq.s32.totalorder %s16, 0
    %p79 = por %p77, %p78
    %p80 = scmp.ne.s32.totalorder %s66, %s67
    %p81 = scmp.eq.s32.totalorder %s17, 3
    %p82 = por %p80, %p81
    %p84 = scmp.ne.s32.totalorder %s67, %s83
    %p85 = scmp.eq.s32.totalorder %s17, 0
    %p86 = por %p84, %p85
    %s87 = ssub.s32 %s18, %s30
    %s88 = ssub.s32 %s19, %s26
    %s89 = sor.u32 %s87, %s88
    %p90 = scmp.eq.s32.totalorder %s89, 0
    %s92 = sadd.s32 %s91, 1
    %s93 = scalar_select %p90, %s91, %s92
    %p96 = pneg %p90
    %p97 = scmp.eq.s32.totalorder %s11, 3
    %p98 = por %p96, %p97
    %p99 = scmp.ne.s32.totalorder %s91, %s94
    %p100 = scmp.eq.s32.totalorder %s11, 0
    %p101 = por %p99, %p100
    %p102 = scmp.ne.s32.totalorder %s91, %s94
    %p103 = scmp.eq.s32.totalorder %s16, 3
    %p104 = por %p102, %p103
    %p105 = scmp.ne.s32.totalorder %s94, %s95
    %p106 = scmp.eq.s32.totalorder %s16, 0
    %p107 = por %p105, %p106
    %p108 = scmp.ne.s32.totalorder %s94, %s95
    %p109 = scmp.eq.s32.totalorder %s17, 3
    %p110 = por %p108, %p109
    %p112 = scmp.ne.s32.totalorder %s95, %s111
    %p113 = scmp.eq.s32.totalorder %s17, 0
    %p114 = por %p112, %p113
    %s116 = sadd.s32 %s115, 1
    %p119 = scmp.eq.s32.totalorder %s11, 3
    %p120 = scmp.ne.s32.totalorder %s115, %s117
    %p121 = scmp.eq.s32.totalorder %s11, 0
    %p122 = por %p120, %p121
    %p123 = scmp.ne.s32.totalorder %s115, %s117
    %p124 = scmp.eq.s32.totalorder %s16, 3
    %p125 = por %p123, %p124
    %p126 = scmp.ne.s32.totalorder %s117, %s118
    %p127 = scmp.eq.s32.totalorder %s16, 0
    %p128 = por %p126, %p127
    %p129 = scmp.ne.s32.totalorder %s117, %s118
    %p130 = scmp.eq.s32.totalorder %s17, 3
    %p131 = por %p129, %p130
    %p133 = scmp.ne.s32.totalorder %s118, %s132
    %p134 = scmp.eq.s32.totalorder %s17, 0
    %p135 = por %p133, %p134
    %s137 = sadd.s32 %s136, 1
    %p140 = scmp.eq.s32.totalorder %s11, 3
    %p141 = scmp.ne.s32.totalorder %s136, %s138
    %p142 = scmp.eq.s32.totalorder %s11, 0
    %p143 = por %p141, %p142
    %p144 = scmp.ne.s32.totalorder %s136, %s138
    %p145 = scmp.eq.s32.totalorder %s16, 3
    %p146 = por %p144, %p145
    %p147 = scmp.ne.s32.totalorder %s138, %s139
    %p148 = scmp.eq.s32.totalorder %s16, 0
    %p149 = por %p147, %p148
    %p150 = scmp.ne.s32.totalorder %s138, %s139
    %p151 = scmp.eq.s32.totalorder %s17, 3
    %p152 = por %p150, %p151
    %p154 = scmp.ne.s32.totalorder %s139, %s153
    %p155 = scmp.eq.s32.totalorder %s17, 0
    %p156 = por %p154, %p155
    %s157 = smul.u32 %s18, 2
    %s158 = sadd.s32 %s157, %s19
    %s159 = smul.u32 %s30, 2
    %s160 = sadd.s32 %s159, %s26
    %s161 = ssub.s32 %s158, %s160
    %p162 = scmp.eq.s32.totalorder %s161, 0
    %s164 = sadd.s32 %s163, 1
    %s165 = scalar_select %p162, %s163, %s164
    %p168 = pneg %p162
    %p169 = scmp.eq.s32.totalorder %s11, 3
    %p170 = por %p168, %p169
    %p171 = scmp.ne.s32.totalorder %s163, %s166
    %p172 = scmp.eq.s32.totalorder %s11, 0
    %p173 = por %p171, %p172
    %p174 = scmp.ne.s32.totalorder %s163, %s166
    %p175 = scmp.eq.s32.totalorder %s16, 3
    %p176 = por %p174, %p175
    %p177 = scmp.ne.s32.totalorder %s166, %s167
    %p178 = scmp.eq.s32.totalorder %s16, 0
    %p179 = por %p177, %p178
    %p180 = scmp.ne.s32.totalorder %s166, %s167
    %p181 = scmp.eq.s32.totalorder %s17, 3
    %p182 = por %p180, %p181
    %p184 = scmp.ne.s32.totalorder %s167, %s183
    %p185 = scmp.eq.s32.totalorder %s17, 0
    %p186 = por %p184, %p185
    %p187 = scmp.le.s32.totalorder 1, %s11
    %p188 = scmp.lt.s32.totalorder %s11, 5
    %p189 = pnand %p187, %p188
    %p190 = pneg %p189
    // Predicated region
    $region9: #{upsample.1} parent=5 // pred_check
      _
    $region10: #{upsample.1} parent=5 // pred_check_branch
      %192 = sbr.rel (%p189) target = $region12
    $region11: #{upsample.1} parent=5 // pred_region
      %s193 = ssub.s32 %s11, 1
      // Predicated region
      $region13: #{upsample.1} parent=11 // pred_check
        %p194 = pneg %p128
      $region14: #{upsample.1} parent=11 // pred_check_branch
        %196 = sbr.rel (%p194) target = $region16
      $region15: #{upsample.1} parent=11 // pred_region
        _
      $region16: #{upsample.1} parent=11 // pred_fallthru
        _
      // Predicated region
      $region17: #{upsample.1} parent=11 // pred_check
        %p197 = pneg %p149
      $region18: #{upsample.1} parent=11 // pred_check_branch
        %199 = sbr.rel (%p197) target = $region20
      $region19: #{upsample.1} parent=11 // pred_region
        _
      $region20: #{upsample.1} parent=11 // pred_fallthru
        _
    $region12: #{upsample.1} parent=5 // pred_fallthru
      _
    %p200 = scmp.lt.s32.totalorder %s11, 4
    // Predicated region
    $region21: #{upsample.1} parent=5 // pred_check
      %p201 = pneg %p200
    $region22: #{upsample.1} parent=5 // pred_check_branch
      %203 = sbr.rel (%p201) target = $region24
    $region23: #{upsample.1} parent=5 // pred_region
      // Predicated region
      $region25: #{upsample.1} parent=23 // pred_check
        %p204 = pneg %p45
      $region26: #{upsample.1} parent=23 // pred_check_branch
        %206 = sbr.rel (%p204) target = $region28
      $region27: #{upsample.1} parent=23 // pred_region
        %s207 = smul.u32 8, %s19
        %p208 = scmp.lt.s32.totalorder %s18, 1
        %s209 = scalar_select %p208, %s18, 1
        %p210 = scmp.lt.s32.totalorder %s207, 15
        %s211 = scalar_select %p210, %s207, 15
        %s212 = smul.addr %s211, 2
        %s213 = smul.addr %s209, 32
        %s214 = sadd.s32 %s212, %s213
        %s215 = smul.addr %s214, 4
        %s216 = scalar_lea.vmem %s0, %s215
        %s217 = smul.u32 8, %s19
      $region28: #{upsample.1} parent=23 // pred_fallthru
        _
      // Predicated region
      $region29: #{upsample.1} parent=23 // pred_check
        %p218 = pneg %p73
      $region30: #{upsample.1} parent=23 // pred_check_branch
        %220 = sbr.rel (%p218) target = $region32
      $region31: #{upsample.1} parent=23 // pred_region
        %p221 = scmp.lt.s32.totalorder %s18, 1
        %s222 = scalar_select %p221, %s18, 1
        %p223 = scmp.lt.s32.totalorder %s19, 1
        %s224 = scalar_select %p223, %s19, 1
        %s225 = smul.addr %s224, 2
        %s226 = smul.addr %s222, 4
        %s227 = sadd.s32 %s225, %s226
        %s228 = smul.addr %s227, 4
        %s229 = scalar_lea.vmem %s1, %s228
      $region32: #{upsample.1} parent=23 // pred_fallthru
        _
      // Predicated region
      $region33: #{upsample.1} parent=23 // pred_check
        %p230 = pneg %p101
      $region34: #{upsample.1} parent=23 // pred_check_branch
        %232 = sbr.rel (%p230) target = $region36
      $region35: #{upsample.1} parent=23 // pred_region
        %p233 = scmp.lt.s32.totalorder %s18, 1
        %s234 = scalar_select %p233, %s18, 1
        %p235 = scmp.lt.s32.totalorder %s19, 1
        %s236 = scalar_select %p235, %s19, 1
        %s237 = smul.addr %s236, 2
        %s238 = smul.addr %s234, 4
        %s239 = sadd.s32 %s237, %s238
        %s240 = smul.addr %s239, 4
        %s241 = scalar_lea.vmem %s2, %s240
      $region36: #{upsample.1} parent=23 // pred_fallthru
        _
    $region24: #{upsample.1} parent=5 // pred_fallthru
      _
    %p242 = scmp.le.s32.totalorder 1, %s11
    %p243 = scmp.lt.s32.totalorder %s11, 5
    %p244 = pnand %p242, %p243
    %p245 = pneg %p244
    // Predicated region
    $region37: #{upsample.1} parent=5 // pred_check
      _
    $region38: #{upsample.1} parent=5 // pred_check_branch
      %247 = sbr.rel (%p244) target = $region40
    $region39: #{upsample.1} parent=5 // pred_region
      %s248 = ssub.s32 %s11, 1
      %s249 = smul.u32 8, %s21
      %p250 = scmp.lt.s32.totalorder %s20, 1
      %s251 = scalar_select %p250, %s20, 1
      %p252 = scmp.lt.s32.totalorder %s249, 15
      %s253 = scalar_select %p252, %s249, 15
      %s254 = smul.addr %s253, 2
      %s255 = smul.addr %s251, 32
      %s256 = sadd.s32 %s254, %s255
      %s257 = smul.addr %s256, 4
      %s258 = scalar_lea.vmem %s0, %s257
      %p259 = pneg %p51
      %p260 = pneg %p48
      %p261 = scmp.lt.s32.totalorder %s20, 1
      %s262 = scalar_select %p261, %s20, 1
      %p263 = scmp.lt.s32.totalorder %s21, 1
      %s264 = scalar_select %p263, %s21, 1
      %s265 = smul.addr %s264, 2
      %s266 = smul.addr %s262, 4
      %s267 = sadd.s32 %s265, %s266
      %s268 = smul.addr %s267, 4
      %s269 = scalar_lea.vmem %s1, %s268
      %p270 = pneg %p79
      %p271 = pneg %p76
      %p272 = scmp.lt.s32.totalorder %s20, 1
      %s273 = scalar_select %p272, %s20, 1
      %p274 = scmp.lt.s32.totalorder %s21, 1
      %s275 = scalar_select %p274, %s21, 1
      %s276 = smul.addr %s275, 2
      %s277 = smul.addr %s273, 4
      %s278 = sadd.s32 %s276, %s277
      %s279 = smul.addr %s278, 4
      %s280 = scalar_lea.vmem %s2, %s279
      %p281 = pneg %p107
      %p282 = pneg %p104
      %p283 = pneg %p128
      %p284 = pneg %p125
      %p285 = pneg %p149
      %p286 = pneg %p146
      %p287 = pneg %p179
      %p288 = pneg %p176
      %s289 = smul.u32 %s20, 2
      %s290 = sadd.s32 %s289, %s21
      %s291 = smul.u32 8, %s290
      %p292 = scmp.lt.s32.totalorder %s291, 31
      %s293 = scalar_select %p292, %s291, 31
      %s294 = smul.addr %s293, 4
      %s295 = smul.addr %s294, 8
      %s296 = scalar_lea.vmem %s5, %s295
      %s297 = smul.u32 8, %s21
      %p298 = scmp.lt.s32.totalorder %s20, 1
      %s299 = scalar_select %p298, %s20, 1
      %p300 = scmp.lt.s32.totalorder %s297, 15
      %s301 = scalar_select %p300, %s297, 15
      %s302 = smul.addr %s301, 2
      %s303 = smul.addr %s299, 32
      %s304 = sadd.s32 %s302, %s303
      %s305 = smul.addr %s304, 4
      %s306 = scalar_lea.vmem %s0, %s305
      %s307 = smul.u32 8, %s21
      %p308 = scmp.lt.s32.totalorder %s20, 1
      %s309 = scalar_select %p308, %s20, 1
      %p310 = scmp.lt.s32.totalorder %s21, 1
      %s311 = scalar_select %p310, %s21, 1
      %s312 = smul.addr %s311, 2
      %s313 = smul.addr %s309, 4
      %s314 = sadd.s32 %s312, %s313
      %s315 = smul.addr %s314, 4
      %s316 = scalar_lea.vmem %s1, %s315
      %p317 = scmp.lt.s32.totalorder %s20, 1
      %s318 = scalar_select %p317, %s20, 1
      %p319 = scmp.lt.s32.totalorder %s21, 1
      %s320 = scalar_select %p319, %s21, 1
      %s321 = smul.addr %s320, 2
      %s322 = smul.addr %s318, 4
      %s323 = sadd.s32 %s321, %s322
      %s324 = smul.addr %s323, 4
      %s325 = scalar_lea.vmem %s2, %s324
      %s326 = smul.u32 %s20, 2
      %s327 = sadd.s32 %s326, %s21
      %s328 = smul.u32 8, %s327
      %p329 = scmp.lt.s32.totalorder %s328, 31
      %s330 = scalar_select %p329, %s328, 31
      %s331 = smul.addr %s330, 4
      %s332 = smul.addr %s331, 8
      %s333 = scalar_lea.vmem %s5, %s332
      %s334 = smul.u32 %s20, 2
      %s335 = sadd.s32 %s334, %s21
      %s336 = smul.u32 8, %s335
      %vm338 = vcmask 516096
      %vm339 = vsmask.f32 256
      %vm340 = vmand %vm338, %vm339
      %v341 = vld [vmem:[#allocation2] sm:$0x1]
      %v342 = vsel %vm340, 0, %v341
      %343 = vst [vmem:[#allocation2] sm:$0x1] %v342
      %v344 = vld [vmem:[#allocation2 + $0xc] sm:$0x1]
      %v345 = vsel %vm340, 0, %v344
      %346 = vst [vmem:[#allocation2 + $0xc] sm:$0x1] %v345
      %v347 = vld [vmem:[#allocation2 + $0x18] sm:$0x1]
      %v348 = vsel %vm340, 0, %v347
      %349 = vst [vmem:[#allocation2 + $0x18] sm:$0x1] %v348
      %v350 = vld [vmem:[#allocation2 + $0x24] sm:$0x1]
      %v351 = vsel %vm340, 0, %v350
      %352 = vst [vmem:[#allocation2 + $0x24] sm:$0x1] %v351
      %v353 = vld [vmem:[#allocation2 + $0x30] sm:$0x1]
      %v354 = vsel %vm340, 0, %v353
      %355 = vst [vmem:[#allocation2 + $0x30] sm:$0x1] %v354
      %v356 = vld [vmem:[#allocation2 + $0x3c] sm:$0x1]
      %v357 = vsel %vm340, 0, %v356
      %358 = vst [vmem:[#allocation2 + $0x3c] sm:$0x1] %v357
      %v359 = vld [vmem:[#allocation2 + $0x48] sm:$0x1]
      %v360 = vsel %vm340, 0, %v359
      %361 = vst [vmem:[#allocation2 + $0x48] sm:$0x1] %v360
      %v362 = vld [vmem:[#allocation2 + $0x54] sm:$0x1]
      %v363 = vsel %vm340, 0, %v362
      %364 = vst [vmem:[#allocation2 + $0x54] sm:$0x1] %v363
      %v365 = vld [vmem:[#allocation2 + $0x60] sm:$0x1]
      %v366 = vsel %vm340, 0, %v365
      %367 = vst [vmem:[#allocation2 + $0x60] sm:$0x1] %v366
      %v368 = vld [vmem:[#allocation2 + $0x6c] sm:$0x1]
      %v369 = vsel %vm340, 0, %v368
      %370 = vst [vmem:[#allocation2 + $0x6c] sm:$0x1] %v369
      %vm371 = vsmask.f32 7938
      %vm372 = vmand %vm338, %vm371
      %v373 = vld [vmem:[#allocation2 + $0x8] sm:$0x1]
      %v374 = vsel %vm372, 0, %v373
      %375 = vst [vmem:[#allocation2 + $0x8] sm:$0x1] %v374
      %v376 = vld [vmem:[#allocation2 + $0x14] sm:$0x1]
      %v377 = vsel %vm372, 0, %v376
      %378 = vst [vmem:[#allocation2 + $0x14] sm:$0x1] %v377
      %v379 = vld [vmem:[#allocation2 + $0x20] sm:$0x1]
      %v380 = vsel %vm372, 0, %v379
      %381 = vst [vmem:[#allocation2 + $0x20] sm:$0x1] %v380
      %v382 = vld [vmem:[#allocation2 + $0x2c] sm:$0x1]
      %v383 = vsel %vm372, 0, %v382
      %384 = vst [vmem:[#allocation2 + $0x2c] sm:$0x1] %v383
      %v385 = vld [vmem:[#allocation2 + $0x38] sm:$0x1]
      %v386 = vsel %vm372, 0, %v385
      %387 = vst [vmem:[#allocation2 + $0x38] sm:$0x1] %v386
      %v388 = vld [vmem:[#allocation2 + $0x44] sm:$0x1]
      %v389 = vsel %vm372, 0, %v388
      %390 = vst [vmem:[#allocation2 + $0x44] sm:$0x1] %v389
      %v391 = vld [vmem:[#allocation2 + $0x50] sm:$0x1]
      %v392 = vsel %vm372, 0, %v391
      %393 = vst [vmem:[#allocation2 + $0x50] sm:$0x1] %v392
      %v394 = vld [vmem:[#allocation2 + $0x5c] sm:$0x1]
      %v395 = vsel %vm372, 0, %v394
      %396 = vst [vmem:[#allocation2 + $0x5c] sm:$0x1] %v395
      %v397 = vld [vmem:[#allocation2 + $0x68] sm:$0x1]
      %v398 = vsel %vm372, 0, %v397
      %399 = vst [vmem:[#allocation2 + $0x68] sm:$0x1] %v398
      %v400 = vld [vmem:[#allocation2 + $0x74] sm:$0x1]
      %v401 = vsel %vm372, 0, %v400
      %402 = vst [vmem:[#allocation2 + $0x74] sm:$0x1] %v401
      %v403 = vld [vmem:[%s316] sm:$0xf]
      %v404 = vld [vmem:[%s316 + $0x4] sm:$0xf]
      %vm405 = vsmask.f32 4368
      %vm406 = vmor %vm339, %vm405
      %v408 = vshrl.u32 %v403, 16
      %v410 = vrot.slane %v408, 7
      %v411 = vshll.u32 %v403, 16
      %v413 = vor.u32 %v410, %v411
      %v414 = vrot.slane %v410, 4
      %v416 = vshrl.u32 %v404, 16
      %v418 = vrot.slane %v416, 7
      %v419 = vshll.u32 %v404, 16
      %v421 = vor.u32 %v418, %v419
      %v422 = vsel %vm406, %v414, %v421
      %v423 = vrot.slane %v418, 4
      %vm427 = vcmask 519168
      %vm428 = vmand %vm427, %vm371
      %v429 = vld [vmem:[#allocation2] sm:$0xf]
      %v430 = vsel %vm428, %v413, %v429
      %431 = vst [vmem:[#allocation2] sm:$0xf] %v430
      %vm432 = vcmask 519168
      %433 = vst.msk [vmem:[#allocation2 + $0x4] sm:$0xf] %vm432, %v422
      %v434 = vld [vmem:[#allocation2 + $0x8] sm:$0x1]
      %v435 = vsel %vm340, %v423, %v434
      %436 = vst [vmem:[#allocation2 + $0x8] sm:$0x1] %v435
      %v437 = vld [vmem:[%s325] sm:$0xf]
      %v438 = vld [vmem:[%s325 + $0x4] sm:$0xf]
      %v440 = vshrl.u32 %v437, 16
      %v442 = vrot.slane %v440, 7
      %v443 = vshll.u32 %v437, 16
      %v445 = vor.u32 %v442, %v443
      %v446 = vrot.slane %v442, 4
      %v448 = vshrl.u32 %v438, 16
      %v450 = vrot.slane %v448, 7
      %v451 = vshll.u32 %v438, 16
      %v453 = vor.u32 %v450, %v451
      %v454 = vsel %vm406, %v446, %v453
      %v455 = vrot.slane %v450, 4
      %s459 = scalar_lea.vmem [#allocation2], 108
      %v460 = vld [vmem:[%s459] sm:$0xf]
      %v461 = vsel %vm428, %v445, %v460
      %462 = vst [vmem:[%s459] sm:$0xf] %v461
      %463 = vst.msk [vmem:[%s459 + $0x4] sm:$0xf] %vm432, %v454
      %v464 = vld [vmem:[%s459 + $0x8] sm:$0x1]
      %v465 = vsel %vm340, %v455, %v464
      %466 = vst [vmem:[%s459 + $0x8] sm:$0x1] %v465
      %v467 = vld [vmem:[%s306] sm:$0xf]
      %v468 = vld [vmem:[%s306 + $0x4] sm:$0xf]
      %v469 = vld [vmem:[%s306 + $0x8] sm:$0xf]
      %v470 = vld [vmem:[%s306 + $0xc] sm:$0xf]
      %v471 = vld [vmem:[%s306 + $0x10] sm:$0xf]
      %v472 = vld [vmem:[%s306 + $0x14] sm:$0xf]
      %v473 = vld [vmem:[%s306 + $0x18] sm:$0xf]
      %v474 = vld [vmem:[%s306 + $0x1c] sm:$0xf]
      %v475 = vld [vmem:[%s306 + $0x20] sm:$0xf]
      %v476 = vld [vmem:[%s306 + $0x24] sm:$0xf]
      %v477 = vld [vmem:[%s306 + $0x28] sm:$0xf]
      %v478 = vld [vmem:[%s306 + $0x2c] sm:$0xf]
      %v479 = vld [vmem:[%s306 + $0x30] sm:$0xf]
      %v480 = vld [vmem:[%s306 + $0x34] sm:$0xf]
      %v481 = vld [vmem:[%s306 + $0x38] sm:$0xf]
      %v482 = vld [vmem:[%s306 + $0x3c] sm:$0xf]
      %v484 = vshrl.u32 %v467, 16
      %v486 = vrot.slane %v484, 7
      %v487 = vshll.u32 %v467, 16
      %v489 = vor.u32 %v486, %v487
      %v490 = vrot.slane %v486, 4
      %v492 = vshrl.u32 %v468, 16
      %v494 = vrot.slane %v492, 7
      %v495 = vshll.u32 %v468, 16
      %v497 = vor.u32 %v494, %v495
      %v498 = vsel %vm406, %v490, %v497
      %v499 = vrot.slane %v494, 4
      %v501 = vshrl.u32 %v469, 16
      %v503 = vrot.slane %v501, 7
      %v504 = vshll.u32 %v469, 16
      %v506 = vor.u32 %v503, %v504
      %v507 = vrot.slane %v503, 4
      %v509 = vshrl.u32 %v470, 16
      %v511 = vrot.slane %v509, 7
      %v512 = vshll.u32 %v470, 16
      %v514 = vor.u32 %v511, %v512
      %v515 = vsel %vm406, %v507, %v514
      %v516 = vrot.slane %v511, 4
      %v518 = vshrl.u32 %v471, 16
      %v520 = vrot.slane %v518, 7
      %v521 = vshll.u32 %v471, 16
      %v523 = vor.u32 %v520, %v521
      %v524 = vrot.slane %v520, 4
      %v526 = vshrl.u32 %v472, 16
      %v528 = vrot.slane %v526, 7
      %v529 = vshll.u32 %v472, 16
      %v531 = vor.u32 %v528, %v529
      %v532 = vsel %vm406, %v524, %v531
      %v533 = vrot.slane %v528, 4
      %v535 = vshrl.u32 %v473, 16
      %v537 = vrot.slane %v535, 7
      %v538 = vshll.u32 %v473, 16
      %v540 = vor.u32 %v537, %v538
      %v541 = vrot.slane %v537, 4
      %v543 = vshrl.u32 %v474, 16
      %v545 = vrot.slane %v543, 7
      %v546 = vshll.u32 %v474, 16
      %v548 = vor.u32 %v545, %v546
      %v549 = vsel %vm406, %v541, %v548
      %v550 = vrot.slane %v545, 4
      %v552 = vshrl.u32 %v475, 16
      %v554 = vrot.slane %v552, 7
      %v555 = vshll.u32 %v475, 16
      %v557 = vor.u32 %v554, %v555
      %v558 = vrot.slane %v554, 4
      %v560 = vshrl.u32 %v476, 16
      %v562 = vrot.slane %v560, 7
      %v563 = vshll.u32 %v476, 16
      %v565 = vor.u32 %v562, %v563
      %v566 = vsel %vm406, %v558, %v565
      %v567 = vrot.slane %v562, 4
      %v569 = vshrl.u32 %v477, 16
      %v571 = vrot.slane %v569, 7
      %v572 = vshll.u32 %v477, 16
      %v574 = vor.u32 %v571, %v572
      %v575 = vrot.slane %v571, 4
      %v577 = vshrl.u32 %v478, 16
      %v579 = vrot.slane %v577, 7
      %v580 = vshll.u32 %v478, 16
      %v582 = vor.u32 %v579, %v580
      %v583 = vsel %vm406, %v575, %v582
      %v584 = vrot.slane %v579, 4
      %v586 = vshrl.u32 %v479, 16
      %v588 = vrot.slane %v586, 7
      %v589 = vshll.u32 %v479, 16
      %v591 = vor.u32 %v588, %v589
      %v592 = vrot.slane %v588, 4
      %v594 = vshrl.u32 %v480, 16
      %v596 = vrot.slane %v594, 7
      %v597 = vshll.u32 %v480, 16
      %v599 = vor.u32 %v596, %v597
      %v600 = vsel %vm406, %v592, %v599
      %v601 = vrot.slane %v596, 4
      %v603 = vshrl.u32 %v481, 16
      %v605 = vrot.slane %v603, 7
      %v606 = vshll.u32 %v481, 16
      %v608 = vor.u32 %v605, %v606
      %v609 = vrot.slane %v605, 4
      %v611 = vshrl.u32 %v482, 16
      %v613 = vrot.slane %v611, 7
      %v614 = vshll.u32 %v482, 16
      %v616 = vor.u32 %v613, %v614
      %v617 = vsel %vm406, %v609, %v616
      %v618 = vrot.slane %v613, 4
      %s643 = scalar_lea.vmem [#allocation2], 12
      %v644 = vld [vmem:[%s643] sm:$0xf]
      %v645 = vsel %vm428, %v489, %v644
      %646 = vst [vmem:[%s643] sm:$0xf] %v645
      %647 = vst.msk [vmem:[%s643 + $0x4] sm:$0xf] %vm432, %v498
      %v648 = vld [vmem:[%s643 + $0x8] sm:$0x1]
      %v649 = vsel %vm340, %v499, %v648
      %650 = vst [vmem:[%s643 + $0x8] sm:$0x1] %v649
      %v651 = vld [vmem:[%s643 + $0xc] sm:$0xf]
      %v652 = vsel %vm428, %v506, %v651
      %653 = vst [vmem:[%s643 + $0xc] sm:$0xf] %v652
      %654 = vst.msk [vmem:[%s643 + $0x10] sm:$0xf] %vm432, %v515
      %v655 = vld [vmem:[%s643 + $0x14] sm:$0x1]
      %v656 = vsel %vm340, %v516, %v655
      %657 = vst [vmem:[%s643 + $0x14] sm:$0x1] %v656
      %v658 = vld [vmem:[%s643 + $0x18] sm:$0xf]
      %v659 = vsel %vm428, %v523, %v658
      %660 = vst [vmem:[%s643 + $0x18] sm:$0xf] %v659
      %661 = vst.msk [vmem:[%s643 + $0x1c] sm:$0xf] %vm432, %v532
      %v662 = vld [vmem:[%s643 + $0x20] sm:$0x1]
      %v663 = vsel %vm340, %v533, %v662
      %664 = vst [vmem:[%s643 + $0x20] sm:$0x1] %v663
      %v665 = vld [vmem:[%s643 + $0x24] sm:$0xf]
      %v666 = vsel %vm428, %v540, %v665
      %667 = vst [vmem:[%s643 + $0x24] sm:$0xf] %v666
      %668 = vst.msk [vmem:[%s643 + $0x28] sm:$0xf] %vm432, %v549
      %v669 = vld [vmem:[%s643 + $0x2c] sm:$0x1]
      %v670 = vsel %vm340, %v550, %v669
      %671 = vst [vmem:[%s643 + $0x2c] sm:$0x1] %v670
      %v672 = vld [vmem:[%s643 + $0x30] sm:$0xf]
      %v673 = vsel %vm428, %v557, %v672
      %674 = vst [vmem:[%s643 + $0x30] sm:$0xf] %v673
      %675 = vst.msk [vmem:[%s643 + $0x34] sm:$0xf] %vm432, %v566
      %v676 = vld [vmem:[%s643 + $0x38] sm:$0x1]
      %v677 = vsel %vm340, %v567, %v676
      %678 = vst [vmem:[%s643 + $0x38] sm:$0x1] %v677
      %v679 = vld [vmem:[%s643 + $0x3c] sm:$0xf]
      %v680 = vsel %vm428, %v574, %v679
      %681 = vst [vmem:[%s643 + $0x3c] sm:$0xf] %v680
      %682 = vst.msk [vmem:[%s643 + $0x40] sm:$0xf] %vm432, %v583
      %v683 = vld [vmem:[%s643 + $0x44] sm:$0x1]
      %v684 = vsel %vm340, %v584, %v683
      %685 = vst [vmem:[%s643 + $0x44] sm:$0x1] %v684
      %v686 = vld [vmem:[%s643 + $0x48] sm:$0xf]
      %v687 = vsel %vm428, %v591, %v686
      %688 = vst [vmem:[%s643 + $0x48] sm:$0xf] %v687
      %689 = vst.msk [vmem:[%s643 + $0x4c] sm:$0xf] %vm432, %v600
      %v690 = vld [vmem:[%s643 + $0x50] sm:$0x1]
      %v691 = vsel %vm340, %v601, %v690
      %692 = vst [vmem:[%s643 + $0x50] sm:$0x1] %v691
      %v693 = vld [vmem:[%s643 + $0x54] sm:$0xf]
      %v694 = vsel %vm428, %v608, %v693
      %695 = vst [vmem:[%s643 + $0x54] sm:$0xf] %v694
      %696 = vst.msk [vmem:[%s643 + $0x58] sm:$0xf] %vm432, %v617
      %v697 = vld [vmem:[%s643 + $0x5c] sm:$0x1]
      %v698 = vsel %vm340, %v618, %v697
      %699 = vst [vmem:[%s643 + $0x5c] sm:$0x1] %v698
      %v700 = vld [vmem:[#allocation2] sm:$0xf]
      %v701 = vld [vmem:[#allocation2 + $0x4] sm:$0xf]
      %v702 = vld [vmem:[#allocation2 + $0x8] sm:$0x1]
      %v703 = vld [vmem:[#allocation2 + $0xc] sm:$0xf]
      %v704 = vld [vmem:[#allocation2 + $0x10] sm:$0xf]
      %v705 = vld [vmem:[#allocation2 + $0x14] sm:$0x1]
      %v706 = vld [vmem:[#allocation2 + $0x18] sm:$0xf]
      %v707 = vld [vmem:[#allocation2 + $0x1c] sm:$0xf]
      %v708 = vld [vmem:[#allocation2 + $0x20] sm:$0x1]
      %v709 = vld [vmem:[#allocation2 + $0x24] sm:$0xf]
      %v710 = vld [vmem:[#allocation2 + $0x28] sm:$0xf]
      %v711 = vld [vmem:[#allocation2 + $0x2c] sm:$0x1]
      %v712 = vld [vmem:[#allocation2 + $0x30] sm:$0xf]
      %v713 = vld [vmem:[#allocation2 + $0x34] sm:$0xf]
      %v714 = vld [vmem:[#allocation2 + $0x38] sm:$0x1]
      %v715 = vld [vmem:[#allocation2 + $0x3c] sm:$0xf]
      %v716 = vld [vmem:[#allocation2 + $0x40] sm:$0xf]
      %v717 = vld [vmem:[#allocation2 + $0x44] sm:$0x1]
      %v718 = vld [vmem:[#allocation2 + $0x48] sm:$0xf]
      %v719 = vld [vmem:[#allocation2 + $0x4c] sm:$0xf]
      %v720 = vld [vmem:[#allocation2 + $0x50] sm:$0x1]
      %v721 = vld [vmem:[#allocation2 + $0x54] sm:$0xf]
      %v722 = vld [vmem:[#allocation2 + $0x58] sm:$0xf]
      %v723 = vld [vmem:[#allocation2 + $0x5c] sm:$0x1]
      %v724 = vld [vmem:[#allocation2 + $0x60] sm:$0xf]
      %v725 = vld [vmem:[#allocation2 + $0x64] sm:$0xf]
      %v726 = vld [vmem:[#allocation2 + $0x68] sm:$0x1]
      %v727 = vld [vmem:[#allocation2 + $0x6c] sm:$0xf]
      %v728 = vld [vmem:[#allocation2 + $0x70] sm:$0xf]
      %v729 = vld [vmem:[#allocation2 + $0x74] sm:$0x1]
      %v746 = vunpack.c.l.b16 %v700
      %v747 = vunpack.c.l.b16 %v701
      %v748 = vunpack.c.l.b16 %v703
      %v749 = vunpack.c.l.b16 %v704
      %v750 = vunpack.c.l.b16 %v706
      %v751 = vunpack.c.l.b16 %v707
      %v752 = vunpack.c.l.b16 %v709
      %v753 = vunpack.c.l.b16 %v710
      %v754 = vunpack.c.l.b16 %v712
      %v755 = vunpack.c.l.b16 %v713
      %v756 = vunpack.c.l.b16 %v715
      %v757 = vunpack.c.l.b16 %v716
      %v758 = vunpack.c.l.b16 %v718
      %v759 = vunpack.c.l.b16 %v719
      %v760 = vunpack.c.l.b16 %v721
      %v761 = vunpack.c.l.b16 %v722
      %v762 = vpack.c.b16 %v747, %v746
      %v763 = vpack.c.b16 %v749, %v748
      %v764 = vpack.c.b16 %v751, %v750
      %v765 = vpack.c.b16 %v753, %v752
      %v766 = vpack.c.b16 %v755, %v754
      %v767 = vpack.c.b16 %v757, %v756
      %v768 = vpack.c.b16 %v759, %v758
      %v769 = vpack.c.b16 %v761, %v760
      %v778 = vunpack.c.l.b16 %v702
      %v779 = vunpack.c.l.b16 %v705
      %v780 = vunpack.c.l.b16 %v708
      %v781 = vunpack.c.l.b16 %v711
      %v782 = vunpack.c.l.b16 %v714
      %v783 = vunpack.c.l.b16 %v717
      %v784 = vunpack.c.l.b16 %v720
      %v785 = vunpack.c.l.b16 %v723
      %v786 = vpack.c.b16 %v778, %v778
      %v787 = vpack.c.b16 %v779, %v779
      %v788 = vpack.c.b16 %v780, %v780
      %v789 = vpack.c.b16 %v781, %v781
      %v790 = vpack.c.b16 %v782, %v782
      %v791 = vpack.c.b16 %v783, %v783
      %v792 = vpack.c.b16 %v784, %v784
      %v793 = vpack.c.b16 %v785, %v785
      %vm794 = vsmask.f32 7424
      %v796 = vshrl.u32 %v762, 16
      %v798 = vshll.u32 %v762, 16
      %v800 = vrot.slane %v798, 1
      %v801 = vor.u32 %v796, %v800
      %v803 = vshll.u32 %v786, 16
      %v805 = vrot.slane %v803, 1
      %v806 = vsel %vm794, %v801, %v805
      %v808 = vshrl.u32 %v763, 16
      %v810 = vshll.u32 %v763, 16
      %v812 = vrot.slane %v810, 1
      %v813 = vor.u32 %v808, %v812
      %v815 = vshll.u32 %v787, 16
      %v817 = vrot.slane %v815, 1
      %v818 = vsel %vm794, %v813, %v817
      %v820 = vshrl.u32 %v764, 16
      %v822 = vshll.u32 %v764, 16
      %v824 = vrot.slane %v822, 1
      %v825 = vor.u32 %v820, %v824
      %v827 = vshll.u32 %v788, 16
      %v829 = vrot.slane %v827, 1
      %v830 = vsel %vm794, %v825, %v829
      %v832 = vshrl.u32 %v765, 16
      %v834 = vshll.u32 %v765, 16
      %v836 = vrot.slane %v834, 1
      %v837 = vor.u32 %v832, %v836
      %v839 = vshll.u32 %v789, 16
      %v841 = vrot.slane %v839, 1
      %v842 = vsel %vm794, %v837, %v841
      %v844 = vshrl.u32 %v766, 16
      %v846 = vshll.u32 %v766, 16
      %v848 = vrot.slane %v846, 1
      %v849 = vor.u32 %v844, %v848
      %v851 = vshll.u32 %v790, 16
      %v853 = vrot.slane %v851, 1
      %v854 = vsel %vm794, %v849, %v853
      %v856 = vshrl.u32 %v767, 16
      %v858 = vshll.u32 %v767, 16
      %v860 = vrot.slane %v858, 1
      %v861 = vor.u32 %v856, %v860
      %v863 = vshll.u32 %v791, 16
      %v865 = vrot.slane %v863, 1
      %v866 = vsel %vm794, %v861, %v865
      %v868 = vshrl.u32 %v768, 16
      %v870 = vshll.u32 %v768, 16
      %v872 = vrot.slane %v870, 1
      %v873 = vor.u32 %v868, %v872
      %v875 = vshll.u32 %v792, 16
      %v877 = vrot.slane %v875, 1
      %v878 = vsel %vm794, %v873, %v877
      %v880 = vshrl.u32 %v769, 16
      %v882 = vshll.u32 %v769, 16
      %v884 = vrot.slane %v882, 1
      %v885 = vor.u32 %v880, %v884
      %v887 = vshll.u32 %v793, 16
      %v889 = vrot.slane %v887, 1
      %v890 = vsel %vm794, %v885, %v889
      %891 = vrot.lane.b32.xlu0 %v806, 64
      %v892 = vpop.permute.xlu0 %891
      %893 = vrot.lane.b32.xlu0 %v818, 64
      %v894 = vpop.permute.xlu0 %893
      %895 = vrot.lane.b32.xlu0 %v830, 64
      %v896 = vpop.permute.xlu0 %895
      %897 = vrot.lane.b32.xlu0 %v842, 64
      %v898 = vpop.permute.xlu0 %897
      %899 = vrot.lane.b32.xlu0 %v854, 64
      %v900 = vpop.permute.xlu0 %899
      %901 = vrot.lane.b32.xlu0 %v866, 64
      %v902 = vpop.permute.xlu0 %901
      %903 = vrot.lane.b32.xlu0 %v878, 64
      %v904 = vpop.permute.xlu0 %903
      %905 = vrot.lane.b32.xlu0 %v890, 64
      %v906 = vpop.permute.xlu0 %905
      %vm907 = vcmask 1046528
      %v908 = vrot.slane %v762, 1
      %v909 = vrot.slane %v786, 1
      %v910 = vsel %vm907, %v908, %v909
      %v911 = vrot.slane %v763, 1
      %v912 = vrot.slane %v787, 1
      %v913 = vsel %vm907, %v911, %v912
      %v914 = vrot.slane %v764, 1
      %v915 = vrot.slane %v788, 1
      %v916 = vsel %vm907, %v914, %v915
      %v917 = vrot.slane %v765, 1
      %v918 = vrot.slane %v789, 1
      %v919 = vsel %vm907, %v917, %v918
      %v920 = vrot.slane %v766, 1
      %v921 = vrot.slane %v790, 1
      %v922 = vsel %vm907, %v920, %v921
      %v923 = vrot.slane %v767, 1
      %v924 = vrot.slane %v791, 1
      %v925 = vsel %vm907, %v923, %v924
      %v926 = vrot.slane %v768, 1
      %v927 = vrot.slane %v792, 1
      %v928 = vsel %vm907, %v926, %v927
      %v929 = vrot.slane %v769, 1
      %v930 = vrot.slane %v793, 1
      %v931 = vsel %vm907, %v929, %v930
      %v934 = vunpack.c.l.b16 %v724
      %v935 = vunpack.c.l.b16 %v725
      %v936 = vpack.c.b16 %v935, %v934
      %937 = vrot.lane.b32.xlu0 %v763, 64
      %v938 = vpop.permute.xlu0 %937
      %939 = vrot.lane.b32.xlu0 %v764, 64
      %v940 = vpop.permute.xlu0 %939
      %941 = vrot.lane.b32.xlu0 %v765, 64
      %v942 = vpop.permute.xlu0 %941
      %943 = vrot.lane.b32.xlu0 %v766, 64
      %v944 = vpop.permute.xlu0 %943
      %945 = vrot.lane.b32.xlu0 %v767, 64
      %v946 = vpop.permute.xlu0 %945
      %947 = vrot.lane.b32.xlu0 %v768, 64
      %v948 = vpop.permute.xlu0 %947
      %949 = vrot.lane.b32.xlu0 %v769, 64
      %v950 = vpop.permute.xlu0 %949
      %951 = vrot.lane.b32.xlu0 %v936, 64
      %v952 = vpop.permute.xlu0 %951
      %v954 = vunpack.c.l.b16 %v726
      %v955 = vpack.c.b16 %v954, %v954
      %v957 = vshrl.u32 %v936, 16
      %v959 = vshll.u32 %v936, 16
      %v961 = vrot.slane %v959, 1
      %v962 = vor.u32 %v957, %v961
      %v964 = vshll.u32 %v955, 16
      %v966 = vrot.slane %v964, 1
      %v967 = vsel %vm794, %v962, %v966
      %v968 = vrot.slane %v936, 1
      %v969 = vrot.slane %v955, 1
      %v970 = vsel %vm907, %v968, %v969
      %971 = vrot.lane.b32.xlu0 %v913, 64
      %v972 = vpop.permute.xlu0 %971
      %973 = vrot.lane.b32.xlu0 %v916, 64
      %v974 = vpop.permute.xlu0 %973
      %975 = vrot.lane.b32.xlu0 %v919, 64
      %v976 = vpop.permute.xlu0 %975
      %977 = vrot.lane.b32.xlu0 %v922, 64
      %v978 = vpop.permute.xlu0 %977
      %979 = vrot.lane.b32.xlu0 %v925, 64
      %v980 = vpop.permute.xlu0 %979
      %981 = vrot.lane.b32.xlu0 %v928, 64
      %v982 = vpop.permute.xlu0 %981
      %983 = vrot.lane.b32.xlu0 %v931, 64
      %v984 = vpop.permute.xlu0 %983
      %985 = vrot.lane.b32.xlu0 %v970, 64
      %v986 = vpop.permute.xlu0 %985
      %v989 = vunpack.c.l.b16 %v727
      %v990 = vunpack.c.l.b16 %v728
      %v991 = vpack.c.b16 %v990, %v989
      %v993 = vunpack.c.l.b16 %v729
      %v994 = vpack.c.b16 %v993, %v993
      %v996 = vshrl.u32 %v991, 16
      %v998 = vshll.u32 %v991, 16
      %v1000 = vrot.slane %v998, 1
      %v1001 = vor.u32 %v996, %v1000
      %v1003 = vshll.u32 %v994, 16
      %v1005 = vrot.slane %v1003, 1
      %v1006 = vsel %vm794, %v1001, %v1005
      %1007 = vrot.lane.b32.xlu0 %v967, 64
      %v1008 = vpop.permute.xlu0 %1007
      %1009 = vrot.lane.b32.xlu0 %v1006, 64
      %v1010 = vpop.permute.xlu0 %1009
      %v1011 = vrot.slane %v991, 1
      %v1012 = vrot.slane %v994, 1
      %v1013 = vsel %vm907, %v1011, %v1012
      %vm1014 = vcmask 523264
      %v1016 = vsel %vm1014, %v762, %v892
      %v1019 = vsel %vm1014, %v763, %v894
      %v1022 = vsel %vm1014, %v764, %v896
      %v1025 = vsel %vm1014, %v765, %v898
      %v1028 = vsel %vm1014, %v766, %v900
      %v1031 = vsel %vm1014, %v767, %v902
      %v1034 = vsel %vm1014, %v768, %v904
      %v1037 = vsel %vm1014, %v769, %v906
      %v1041 = vsel %vm1014, %v910, %v938
      %v1045 = vsel %vm1014, %v913, %v940
      %v1049 = vsel %vm1014, %v916, %v942
      %v1053 = vsel %vm1014, %v919, %v944
      %v1057 = vsel %vm1014, %v922, %v946
      %v1061 = vsel %vm1014, %v925, %v948
      %v1065 = vsel %vm1014, %v928, %v950
      %v1069 = vsel %vm1014, %v931, %v952
      %v1073 = vsel %vm1014, %v818, %v972
      %v1077 = vsel %vm1014, %v830, %v974
      %v1081 = vsel %vm1014, %v842, %v976
      %v1085 = vsel %vm1014, %v854, %v978
      %v1089 = vsel %vm1014, %v866, %v980
      %v1093 = vsel %vm1014, %v878, %v982
      %v1097 = vsel %vm1014, %v890, %v984
      %v1101 = vsel %vm1014, %v967, %v986
      %v1104 = vsel %vm1014, %v936, %v1008
      %v1107 = vsel %vm1014, %v991, %v1010
      %v1109 = vld [vmem:[%s3] sm:$0xff]
      %v1110 = vld [vmem:[%s3 + $0x8] sm:$0xff]
      %v1111 = vld [vmem:[%s3 + $0x10] sm:$0xff]
      %v1112 = vld [vmem:[%s3 + $0x18] sm:$0xff]
      %v1113 = vld [vmem:[%s3 + $0x20] sm:$0xff]
      %v1114 = vld [vmem:[%s3 + $0x28] sm:$0xff]
      %v1115 = vld [vmem:[%s3 + $0x30] sm:$0xff]
      %v1116 = vld [vmem:[%s3 + $0x38] sm:$0xff]
      %v1117 = vld [vmem:[%s3 + $0x40] sm:$0xff]
      %v1118 = vld [vmem:[%s3 + $0x48] sm:$0xff]
      %v1119 = vld [vmem:[%s3 + $0x50] sm:$0xff]
      %v1120 = vld [vmem:[%s3 + $0x58] sm:$0xff]
      %v1121 = vld [vmem:[%s3 + $0x60] sm:$0xff]
      %v1122 = vld [vmem:[%s3 + $0x68] sm:$0xff]
      %v1123 = vld [vmem:[%s3 + $0x70] sm:$0xff]
      %v1124 = vld [vmem:[%s3 + $0x78] sm:$0xff]
      %v1125 = vld [vmem:[%s3 + $0x80] sm:$0xff]
      %v1126 = vld [vmem:[%s3 + $0x88] sm:$0xff]
      %v1127 = vld [vmem:[%s3 + $0x90] sm:$0xff]
      %v1128 = vld [vmem:[%s3 + $0x98] sm:$0xff]
      %v1129 = vld [vmem:[%s3 + $0xa0] sm:$0xff]
      %v1130 = vld [vmem:[%s3 + $0xa8] sm:$0xff]
      %v1131 = vld [vmem:[%s3 + $0xb0] sm:$0xff]
      %v1132 = vld [vmem:[%s3 + $0xb8] sm:$0xff]
      %v1133 = vld [vmem:[%s3 + $0xc0] sm:$0xff]
      %v1134 = vld [vmem:[%s3 + $0xc8] sm:$0xff]
      %v1135 = vld [vmem:[%s3 + $0xd0] sm:$0xff]
      %v1136 = vld [vmem:[%s3 + $0xd8] sm:$0xff]
      %v1137 = vld [vmem:[%s3 + $0xe0] sm:$0xff]
      %v1138 = vld [vmem:[%s3 + $0xe8] sm:$0xff]
      %v1139 = vld [vmem:[%s3 + $0xf0] sm:$0xff]
      %v1140 = vld [vmem:[%s3 + $0xf8] sm:$0xff]
      %v1141 = vld [vmem:[%s3 + $0x100] sm:$0xff]
      %v1142 = vld [vmem:[%s3 + $0x108] sm:$0xff]
      %v1143 = vld [vmem:[%s3 + $0x110] sm:$0xff]
      %v1144 = vld [vmem:[%s3 + $0x118] sm:$0xff]
      %v1145 = vld [vmem:[%s3 + $0x120] sm:$0xff]
      %v1146 = vld [vmem:[%s3 + $0x128] sm:$0xff]
      %v1147 = vld [vmem:[%s3 + $0x130] sm:$0xff]
      %v1148 = vld [vmem:[%s3 + $0x138] sm:$0xff]
      %v1149 = vld [vmem:[%s3 + $0x140] sm:$0xff]
      %v1150 = vld [vmem:[%s3 + $0x148] sm:$0xff]
      %v1151 = vld [vmem:[%s3 + $0x150] sm:$0xff]
      %v1152 = vld [vmem:[%s3 + $0x158] sm:$0xff]
      %v1153 = vld [vmem:[%s3 + $0x160] sm:$0xff]
      %v1154 = vld [vmem:[%s3 + $0x168] sm:$0xff]
      %v1155 = vld [vmem:[%s3 + $0x170] sm:$0xff]
      %v1156 = vld [vmem:[%s3 + $0x178] sm:$0xff]
      %v1157 = vld [vmem:[%s3 + $0x180] sm:$0xff]
      %v1158 = vld [vmem:[%s3 + $0x188] sm:$0xff]
      %v1159 = vld [vmem:[%s3 + $0x190] sm:$0xff]
      %v1160 = vld [vmem:[%s3 + $0x198] sm:$0xff]
      %v1161 = vld [vmem:[%s3 + $0x1a0] sm:$0xff]
      %v1162 = vld [vmem:[%s3 + $0x1a8] sm:$0xff]
      %v1163 = vld [vmem:[%s3 + $0x1b0] sm:$0xff]
      %v1164 = vld [vmem:[%s3 + $0x1b8] sm:$0xff]
      %v1165 = vld [vmem:[%s3 + $0x1c0] sm:$0xff]
      %v1166 = vld [vmem:[%s3 + $0x1c8] sm:$0xff]
      %v1167 = vld [vmem:[%s3 + $0x1d0] sm:$0xff]
      %v1168 = vld [vmem:[%s3 + $0x1d8] sm:$0xff]
      %v1169 = vld [vmem:[%s3 + $0x1e0] sm:$0xff]
      %v1170 = vld [vmem:[%s3 + $0x1e8] sm:$0xff]
      %v1171 = vld [vmem:[%s3 + $0x1f0] sm:$0xff]
      %v1172 = vld [vmem:[%s3 + $0x1f8] sm:$0xff]
      %v1173 = vld [vmem:[%s3 + $0x200] sm:$0xff]
      %v1174 = vld [vmem:[%s3 + $0x208] sm:$0xff]
      %v1175 = vld [vmem:[%s3 + $0x210] sm:$0xff]
      %v1176 = vld [vmem:[%s3 + $0x218] sm:$0xff]
      %v1177 = vld [vmem:[%s3 + $0x220] sm:$0xff]
      %v1178 = vld [vmem:[%s3 + $0x228] sm:$0xff]
      %v1179 = vld [vmem:[%s3 + $0x230] sm:$0xff]
      %v1180 = vld [vmem:[%s3 + $0x238] sm:$0xff]
      %v1181 = vld [vmem:[%s4] sm:$0x3]
      %v1183 = vlaneseq
      %v1184 = vshrl.u32 %v1183, 7
      %v1185 = vsub.s32 0, %v1184
      %v1186 = vrot.slane %v1181, %v1185
      %v1187 = vlaneseq
      %v1188 = vshrl.u32 %v1187, 7
      %v1189 = vsub.s32 1, %v1188
      %v1190 = vrot.slane %v1181, %v1189
      %v1265 = vunpack.c.l.b16 %v1109
      %v1266 = vunpack.c.h.b16 %v1109
      %v1267 = vunpack.c.l.b16 %v1110
      %v1268 = vunpack.c.h.b16 %v1110
      %v1269 = vunpack.c.l.b16 %v1111
      %v1270 = vunpack.c.h.b16 %v1111
      %v1271 = vunpack.c.l.b16 %v1112
      %v1272 = vunpack.c.h.b16 %v1112
      %v1273 = vunpack.c.l.b16 %v1113
      %v1274 = vunpack.c.h.b16 %v1113
      %v1275 = vunpack.c.l.b16 %v1114
      %v1276 = vunpack.c.h.b16 %v1114
      %v1277 = vunpack.c.l.b16 %v1115
      %v1278 = vunpack.c.h.b16 %v1115
      %v1279 = vunpack.c.l.b16 %v1116
      %v1280 = vunpack.c.h.b16 %v1116
      %v1281 = vunpack.c.l.b16 %v1117
      %v1282 = vunpack.c.h.b16 %v1117
      %v1283 = vunpack.c.l.b16 %v1118
      %v1284 = vunpack.c.h.b16 %v1118
      %v1285 = vunpack.c.l.b16 %v1119
      %v1286 = vunpack.c.h.b16 %v1119
      %v1287 = vunpack.c.l.b16 %v1120
      %v1288 = vunpack.c.h.b16 %v1120
      %v1289 = vunpack.c.l.b16 %v1121
      %v1290 = vunpack.c.h.b16 %v1121
      %v1291 = vunpack.c.l.b16 %v1122
      %v1292 = vunpack.c.h.b16 %v1122
      %v1293 = vunpack.c.l.b16 %v1123
      %v1294 = vunpack.c.h.b16 %v1123
      %v1295 = vunpack.c.l.b16 %v1124
      %v1296 = vunpack.c.h.b16 %v1124
      %v1297 = vunpack.c.l.b16 %v1125
      %v1298 = vunpack.c.h.b16 %v1125
      %v1299 = vunpack.c.l.b16 %v1126
      %v1300 = vunpack.c.h.b16 %v1126
      %v1301 = vunpack.c.l.b16 %v1127
      %v1302 = vunpack.c.h.b16 %v1127
      %v1303 = vunpack.c.l.b16 %v1128
      %v1304 = vunpack.c.h.b16 %v1128
      %v1305 = vunpack.c.l.b16 %v1129
      %v1306 = vunpack.c.h.b16 %v1129
      %v1307 = vunpack.c.l.b16 %v1130
      %v1308 = vunpack.c.h.b16 %v1130
      %v1309 = vunpack.c.l.b16 %v1131
      %v1310 = vunpack.c.h.b16 %v1131
      %v1311 = vunpack.c.l.b16 %v1132
      %v1312 = vunpack.c.h.b16 %v1132
      %v1313 = vunpack.c.l.b16 %v1133
      %v1314 = vunpack.c.h.b16 %v1133
      %v1315 = vunpack.c.l.b16 %v1134
      %v1316 = vunpack.c.h.b16 %v1134
      %v1317 = vunpack.c.l.b16 %v1135
      %v1318 = vunpack.c.h.b16 %v1135
      %v1319 = vunpack.c.l.b16 %v1136
      %v1320 = vunpack.c.h.b16 %v1136
      %v1321 = vunpack.c.l.b16 %v1137
      %v1322 = vunpack.c.h.b16 %v1137
      %v1323 = vunpack.c.l.b16 %v1138
      %v1324 = vunpack.c.h.b16 %v1138
      %v1325 = vunpack.c.l.b16 %v1139
      %v1326 = vunpack.c.h.b16 %v1139
      %v1327 = vunpack.c.l.b16 %v1140
      %v1328 = vunpack.c.h.b16 %v1140
      %v1329 = vunpack.c.l.b16 %v1141
      %v1330 = vunpack.c.h.b16 %v1141
      %v1331 = vunpack.c.l.b16 %v1142
      %v1332 = vunpack.c.h.b16 %v1142
      %v1333 = vunpack.c.l.b16 %v1143
      %v1334 = vunpack.c.h.b16 %v1143
      %v1335 = vunpack.c.l.b16 %v1144
      %v1336 = vunpack.c.h.b16 %v1144
      %v1337 = vunpack.c.l.b16 %v1145
      %v1338 = vunpack.c.h.b16 %v1145
      %v1339 = vunpack.c.l.b16 %v1146
      %v1340 = vunpack.c.h.b16 %v1146
      %v1341 = vunpack.c.l.b16 %v1147
      %v1342 = vunpack.c.h.b16 %v1147
      %v1343 = vunpack.c.l.b16 %v1148
      %v1344 = vunpack.c.h.b16 %v1148
      %v1345 = vunpack.c.l.b16 %v1149
      %v1346 = vunpack.c.h.b16 %v1149
      %v1347 = vunpack.c.l.b16 %v1150
      %v1348 = vunpack.c.h.b16 %v1150
      %v1349 = vunpack.c.l.b16 %v1151
      %v1350 = vunpack.c.h.b16 %v1151
      %v1351 = vunpack.c.l.b16 %v1152
      %v1352 = vunpack.c.h.b16 %v1152
      %v1353 = vunpack.c.l.b16 %v1153
      %v1354 = vunpack.c.h.b16 %v1153
      %v1355 = vunpack.c.l.b16 %v1154
      %v1356 = vunpack.c.h.b16 %v1154
      %v1357 = vunpack.c.l.b16 %v1155
      %v1358 = vunpack.c.h.b16 %v1155
      %v1359 = vunpack.c.l.b16 %v1156
      %v1360 = vunpack.c.h.b16 %v1156
      %v1361 = vunpack.c.l.b16 %v1157
      %v1362 = vunpack.c.h.b16 %v1157
      %v1363 = vunpack.c.l.b16 %v1158
      %v1364 = vunpack.c.h.b16 %v1158
      %v1365 = vunpack.c.l.b16 %v1159
      %v1366 = vunpack.c.h.b16 %v1159
      %v1367 = vunpack.c.l.b16 %v1160
      %v1368 = vunpack.c.h.b16 %v1160
      %v1369 = vunpack.c.l.b16 %v1161
      %v1370 = vunpack.c.h.b16 %v1161
      %v1371 = vunpack.c.l.b16 %v1162
      %v1372 = vunpack.c.h.b16 %v1162
      %v1373 = vunpack.c.l.b16 %v1163
      %v1374 = vunpack.c.h.b16 %v1163
      %v1375 = vunpack.c.l.b16 %v1164
      %v1376 = vunpack.c.h.b16 %v1164
      %v1377 = vunpack.c.l.b16 %v1165
      %v1378 = vunpack.c.h.b16 %v1165
      %v1379 = vunpack.c.l.b16 %v1166
      %v1380 = vunpack.c.h.b16 %v1166
      %v1381 = vunpack.c.l.b16 %v1167
      %v1382 = vunpack.c.h.b16 %v1167
      %v1383 = vunpack.c.l.b16 %v1168
      %v1384 = vunpack.c.h.b16 %v1168
      %v1385 = vunpack.c.l.b16 %v1169
      %v1386 = vunpack.c.h.b16 %v1169
      %v1387 = vunpack.c.l.b16 %v1170
      %v1388 = vunpack.c.h.b16 %v1170
      %v1389 = vunpack.c.l.b16 %v1171
      %v1390 = vunpack.c.h.b16 %v1171
      %v1391 = vunpack.c.l.b16 %v1172
      %v1392 = vunpack.c.h.b16 %v1172
      %v1393 = vunpack.c.l.b16 %v1173
      %v1394 = vunpack.c.h.b16 %v1173
      %v1395 = vunpack.c.l.b16 %v1174
      %v1396 = vunpack.c.h.b16 %v1174
      %v1397 = vunpack.c.l.b16 %v1175
      %v1398 = vunpack.c.h.b16 %v1175
      %v1399 = vunpack.c.l.b16 %v1176
      %v1400 = vunpack.c.h.b16 %v1176
      %v1401 = vunpack.c.l.b16 %v1177
      %v1402 = vunpack.c.h.b16 %v1177
      %v1403 = vunpack.c.l.b16 %v1178
      %v1404 = vunpack.c.h.b16 %v1178
      %v1405 = vunpack.c.l.b16 %v1179
      %v1406 = vunpack.c.h.b16 %v1179
      %v1407 = vunpack.c.l.b16 %v1180
      %v1408 = vunpack.c.h.b16 %v1180
      %v1409 = vpack.c.b16 %v1267, %v1265
      %v1410 = vpack.c.b16 %v1268, %v1266
      %v1411 = vpack.c.b16 %v1271, %v1269
      %v1412 = vpack.c.b16 %v1272, %v1270
      %v1413 = vpack.c.b16 %v1275, %v1273
      %v1414 = vpack.c.b16 %v1276, %v1274
      %v1415 = vpack.c.b16 %v1279, %v1277
      %v1416 = vpack.c.b16 %v1280, %v1278
      %v1417 = vpack.c.b16 %v1283, %v1281
      %v1418 = vpack.c.b16 %v1284, %v1282
      %v1419 = vpack.c.b16 %v1287, %v1285
      %v1420 = vpack.c.b16 %v1288, %v1286
      %v1421 = vpack.c.b16 %v1291, %v1289
      %v1422 = vpack.c.b16 %v1292, %v1290
      %v1423 = vpack.c.b16 %v1295, %v1293
      %v1424 = vpack.c.b16 %v1296, %v1294
      %v1425 = vpack.c.b16 %v1299, %v1297
      %v1426 = vpack.c.b16 %v1300, %v1298
      %v1427 = vpack.c.b16 %v1303, %v1301
      %v1428 = vpack.c.b16 %v1304, %v1302
      %v1429 = vpack.c.b16 %v1307, %v1305
      %v1430 = vpack.c.b16 %v1308, %v1306
      %v1431 = vpack.c.b16 %v1311, %v1309
      %v1432 = vpack.c.b16 %v1312, %v1310
      %v1433 = vpack.c.b16 %v1315, %v1313
      %v1434 = vpack.c.b16 %v1316, %v1314
      %v1435 = vpack.c.b16 %v1319, %v1317
      %v1436 = vpack.c.b16 %v1320, %v1318
      %v1437 = vpack.c.b16 %v1323, %v1321
      %v1438 = vpack.c.b16 %v1324, %v1322
      %v1439 = vpack.c.b16 %v1327, %v1325
      %v1440 = vpack.c.b16 %v1328, %v1326
      %v1441 = vpack.c.b16 %v1331, %v1329
      %v1442 = vpack.c.b16 %v1332, %v1330
      %v1443 = vpack.c.b16 %v1335, %v1333
      %v1444 = vpack.c.b16 %v1336, %v1334
      %v1445 = vpack.c.b16 %v1339, %v1337
      %v1446 = vpack.c.b16 %v1340, %v1338
      %v1447 = vpack.c.b16 %v1343, %v1341
      %v1448 = vpack.c.b16 %v1344, %v1342
      %v1449 = vpack.c.b16 %v1347, %v1345
      %v1450 = vpack.c.b16 %v1348, %v1346
      %v1451 = vpack.c.b16 %v1351, %v1349
      %v1452 = vpack.c.b16 %v1352, %v1350
      %v1453 = vpack.c.b16 %v1355, %v1353
      %v1454 = vpack.c.b16 %v1356, %v1354
      %v1455 = vpack.c.b16 %v1359, %v1357
      %v1456 = vpack.c.b16 %v1360, %v1358
      %v1457 = vpack.c.b16 %v1363, %v1361
      %v1458 = vpack.c.b16 %v1364, %v1362
      %v1459 = vpack.c.b16 %v1367, %v1365
      %v1460 = vpack.c.b16 %v1368, %v1366
      %v1461 = vpack.c.b16 %v1371, %v1369
      %v1462 = vpack.c.b16 %v1372, %v1370
      %v1463 = vpack.c.b16 %v1375, %v1373
      %v1464 = vpack.c.b16 %v1376, %v1374
      %v1465 = vpack.c.b16 %v1379, %v1377
      %v1466 = vpack.c.b16 %v1380, %v1378
      %v1467 = vpack.c.b16 %v1383, %v1381
      %v1468 = vpack.c.b16 %v1384, %v1382
      %v1469 = vpack.c.b16 %v1387, %v1385
      %v1470 = vpack.c.b16 %v1388, %v1386
      %v1471 = vpack.c.b16 %v1391, %v1389
      %v1472 = vpack.c.b16 %v1392, %v1390
      %v1473 = vpack.c.b16 %v1395, %v1393
      %v1474 = vpack.c.b16 %v1396, %v1394
      %v1475 = vpack.c.b16 %v1399, %v1397
      %v1476 = vpack.c.b16 %v1400, %v1398
      %v1477 = vpack.c.b16 %v1403, %v1401
      %v1478 = vpack.c.b16 %v1404, %v1402
      %v1479 = vpack.c.b16 %v1407, %v1405
      %v1480 = vpack.c.b16 %v1408, %v1406
      %v1553 = vsel %vm1014, %v916, 0
      %v1555 = vsel %vm1014, %v919, 0
      %v1557 = vsel %vm1014, %v922, 0
      %v1559 = vsel %vm1014, %v925, 0
      %v1561 = vsel %vm1014, %v928, 0
      %v1563 = vsel %vm1014, %v931, 0
      %v1566 = vsel %vm1014, %v970, 0
      %v1569 = vsel %vm1014, %v1013, 0
      %1571 = vmatprep.subr.bf16.mxu0 %v1410
      %1572 = vmatpush1.bf16.msra.mxu0 %v1409
      %1573 = vmatprep.subr.bf16.mxu0 %v1412
      %1574 = vmatpush1.bf16.msra.mxu0 %v1411
      %1575 = vmatprep.subr.bf16.mxu0 %v1414
      %1576 = vmatpush1.bf16.msra.mxu0 %v1413
      %1577 = vmatprep.subr.bf16.mxu0 %v1416
      %1578 = vmatpush1.bf16.msra.mxu0 %v1415
      %1579 = vmatprep.subr.bf16.mxu0 %v1418
      %1580 = vmatpush1.bf16.msra.mxu0 %v1417
      %1581 = vmatprep.subr.bf16.mxu0 %v1420
      %1582 = vmatpush1.bf16.msra.mxu0 %v1419
      %1583 = vmatprep.subr.bf16.mxu0 %v1422
      %1584 = vmatpush1.bf16.msra.mxu0 %v1421
      %1585 = vmatprep.subr.bf16.mxu0 %v1424
      %1586 = vmatpush1.bf16.msra.mxu0 %v1423
      %1587 = vmatprep.subr.bf16.mxu0 %v1426
      %1588 = vmatpush1.bf16.msra.mxu0 %v1425
      %1589 = vmatprep.subr.bf16.mxu0 %v1428
      %1590 = vmatpush1.bf16.msra.mxu0 %v1427
      %1591 = vmatprep.subr.bf16.mxu0 %v1430
      %1592 = vmatpush1.bf16.msra.mxu0 %v1429
      %1593 = vmatprep.subr.bf16.mxu0 %v1432
      %1594 = vmatpush1.bf16.msra.mxu0 %v1431
      %1595 = vmatprep.subr.bf16.mxu0 %v1434
      %1596 = vmatpush1.bf16.msra.mxu0 %v1433
      %1597 = vmatprep.subr.bf16.mxu0 %v1436
      %1598 = vmatpush1.bf16.msra.mxu0 %v1435
      %1599 = vmatprep.subr.bf16.mxu0 %v1438
      %1600 = vmatpush1.bf16.msra.mxu0 %v1437
      %1601 = vmatprep.subr.bf16.mxu0 %v1440
      %1602 = vmatpush1.bf16.msra.mxu0 %v1439
      %1603 = vmatprep.mubr.bf16.mxu0 %v1041
      %1604 = vmatmul.mubr.bf16.gmra.mrb[0].mxu0 %v1016
      %v1605 = vpop.f32.mrb[0].mxu0
      %v1606 = vadd.f32 %v1186, %v1605
      %v1607 = vpop.f32.mrb[0].mxu0
      %v1608 = vadd.f32 %v1190, %v1607
      %v1609 = vpop.f32.mrb[0].mxu0
      %v1610 = vadd.f32 %v1186, %v1609
      %v1611 = vpop.f32.mrb[0].mxu0
      %v1612 = vadd.f32 %v1190, %v1611
      %1613 = vmatprep.mubr.bf16.mxu0 %v1045
      %1614 = vmatmul.mubr.bf16.gmra.mrb[0].mxu0 %v1019
      %v1615 = vpop.f32.mrb[0].mxu0
      %v1616 = vadd.f32 %v1186, %v1615
      %v1617 = vpop.f32.mrb[0].mxu0
      %v1618 = vadd.f32 %v1190, %v1617
      %v1619 = vpop.f32.mrb[0].mxu0
      %v1620 = vadd.f32 %v1186, %v1619
      %v1621 = vpop.f32.mrb[0].mxu0
      %v1622 = vadd.f32 %v1190, %v1621
      %1623 = vmatprep.mubr.bf16.mxu0 %v1049
      %1624 = vmatmul.mubr.bf16.gmra.mrb[0].mxu0 %v1022
      %v1625 = vpop.f32.mrb[0].mxu0
      %v1626 = vadd.f32 %v1186, %v1625
      %v1627 = vpop.f32.mrb[0].mxu0
      %v1628 = vadd.f32 %v1190, %v1627
      %v1629 = vpop.f32.mrb[0].mxu0
      %v1630 = vadd.f32 %v1186, %v1629
      %v1631 = vpop.f32.mrb[0].mxu0
      %v1632 = vadd.f32 %v1190, %v1631
      %1633 = vmatprep.mubr.bf16.mxu0 %v1053
      %1634 = vmatmul.mubr.bf16.gmra.mrb[0].mxu0 %v1025
      %v1635 = vpop.f32.mrb[0].mxu0
      %v1636 = vadd.f32 %v1186, %v1635
      %v1637 = vpop.f32.mrb[0].mxu0
      %v1638 = vadd.f32 %v1190, %v1637
      %v1639 = vpop.f32.mrb[0].mxu0
      %v1640 = vadd.f32 %v1186, %v1639
      %v1641 = vpop.f32.mrb[0].mxu0
      %v1642 = vadd.f32 %v1190, %v1641
      %1643 = vmatprep.mubr.bf16.mxu0 %v1057
      %1644 = vmatmul.mubr.bf16.gmra.mrb[0].mxu0 %v1028
      %v1645 = vpop.f32.mrb[0].mxu0
      %v1646 = vadd.f32 %v1186, %v1645
      %v1647 = vpop.f32.mrb[0].mxu0
      %v1648 = vadd.f32 %v1190, %v1647
      %v1649 = vpop.f32.mrb[0].mxu0
      %v1650 = vadd.f32 %v1186, %v1649
      %v1651 = vpop.f32.mrb[0].mxu0
      %v1652 = vadd.f32 %v1190, %v1651
      %1653 = vmatprep.mubr.bf16.mxu0 %v1061
      %1654 = vmatmul.mubr.bf16.gmra.mrb[0].mxu0 %v1031
      %v1655 = vpop.f32.mrb[0].mxu0
      %v1656 = vadd.f32 %v1186, %v1655
      %v1657 = vpop.f32.mrb[0].mxu0
      %v1658 = vadd.f32 %v1190, %v1657
      %v1659 = vpop.f32.mrb[0].mxu0
      %v1660 = vadd.f32 %v1186, %v1659
      %v1661 = vpop.f32.mrb[0].mxu0
      %v1662 = vadd.f32 %v1190, %v1661
      %1663 = vmatprep.mubr.bf16.mxu0 %v1065
      %1664 = vmatmul.mubr.bf16.gmra.mrb[0].mxu0 %v1034
      %v1665 = vpop.f32.mrb[0].mxu0
      %v1666 = vadd.f32 %v1186, %v1665
      %v1667 = vpop.f32.mrb[0].mxu0
      %v1668 = vadd.f32 %v1190, %v1667
      %v1669 = vpop.f32.mrb[0].mxu0
      %v1670 = vadd.f32 %v1186, %v1669
      %v1671 = vpop.f32.mrb[0].mxu0
      %v1672 = vadd.f32 %v1190, %v1671
      %1673 = vmatprep.mubr.bf16.mxu0 %v1069
      %1674 = vmatmul.mubr.bf16.gmra.mrb[0].mxu0 %v1037
      %v1675 = vpop.f32.mrb[0].mxu0
      %v1676 = vadd.f32 %v1186, %v1675
      %v1677 = vpop.f32.mrb[0].mxu0
      %v1678 = vadd.f32 %v1190, %v1677
      %v1679 = vpop.f32.mrb[0].mxu0
      %v1680 = vadd.f32 %v1186, %v1679
      %v1681 = vpop.f32.mrb[0].mxu0
      %v1682 = vadd.f32 %v1190, %v1681
      %1683 = vdwg.mxu0
      %1684 = vmatprep.subr.bf16.mxu0 %v1442
      %1685 = vmatpush1.bf16.msra.mxu0 %v1441
      %1686 = vmatprep.subr.bf16.mxu0 %v1444
      %1687 = vmatpush1.bf16.msra.mxu0 %v1443
      %1688 = vmatprep.subr.bf16.mxu0 %v1446
      %1689 = vmatpush1.bf16.msra.mxu0 %v1445
      %1690 = vmatprep.subr.bf16.mxu0 %v1448
      %1691 = vmatpush1.bf16.msra.mxu0 %v1447
      %1692 = vmatprep.subr.bf16.mxu0 %v1450
      %1693 = vmatpush1.bf16.msra.mxu0 %v1449
      %1694 = vmatprep.subr.bf16.mxu0 %v1452
      %1695 = vmatpush1.bf16.msra.mxu0 %v1451
      %1696 = vmatprep.subr.bf16.mxu0 %v1454
      %1697 = vmatpush1.bf16.msra.mxu0 %v1453
      %1698 = vmatprep.subr.bf16.mxu0 %v1456
      %1699 = vmatpush1.bf16.msra.mxu0 %v1455
      %1700 = vmatprep.subr.bf16.mxu0 %v1458
      %1701 = vmatpush1.bf16.msra.mxu0 %v1457
      %1702 = vmatprep.subr.bf16.mxu0 %v1460
      %1703 = vmatpush1.bf16.msra.mxu0 %v1459
      %1704 = vmatprep.subr.bf16.mxu0 %v1462
      %1705 = vmatpush1.bf16.msra.mxu0 %v1461
      %1706 = vmatprep.subr.bf16.mxu0 %v1464
      %1707 = vmatpush1.bf16.msra.mxu0 %v1463
      %1708 = vmatprep.subr.bf16.mxu0 %v1466
      %1709 = vmatpush1.bf16.msra.mxu0 %v1465
      %1710 = vmatprep.subr.bf16.mxu0 %v1468
      %1711 = vmatpush1.bf16.msra.mxu0 %v1467
      %1712 = vmatprep.subr.bf16.mxu0 %v1470
      %1713 = vmatpush1.bf16.msra.mxu0 %v1469
      %1714 = vmatprep.subr.bf16.mxu0 %v1472
      %1715 = vmatpush1.bf16.msra.mxu0 %v1471
      %1716 = vmatprep.mubr.bf16.mxu0 %v1022
      %1717 = vmatmul.mubr.bf16.gmra.mrb[0].mxu0 %v1073
      %v1718 = vpop.f32.mrb[0].mxu0
      %v1719 = vadd.f32 %v1606, %v1718
      %v1720 = vpop.f32.mrb[0].mxu0
      %v1721 = vadd.f32 %v1608, %v1720
      %v1722 = vpop.f32.mrb[0].mxu0
      %v1723 = vadd.f32 %v1610, %v1722
      %v1724 = vpop.f32.mrb[0].mxu0
      %v1725 = vadd.f32 %v1612, %v1724
      %1726 = vmatprep.mubr.bf16.mxu0 %v1025
      %1727 = vmatmul.mubr.bf16.gmra.mrb[0].mxu0 %v1077
      %v1728 = vpop.f32.mrb[0].mxu0
      %v1729 = vadd.f32 %v1616, %v1728
      %v1730 = vpop.f32.mrb[0].mxu0
      %v1731 = vadd.f32 %v1618, %v1730
      %v1732 = vpop.f32.mrb[0].mxu0
      %v1733 = vadd.f32 %v1620, %v1732
      %v1734 = vpop.f32.mrb[0].mxu0
      %v1735 = vadd.f32 %v1622, %v1734
      %1736 = vmatprep.mubr.bf16.mxu0 %v1028
      %1737 = vmatmul.mubr.bf16.gmra.mrb[0].mxu0 %v1081
      %v1738 = vpop.f32.mrb[0].mxu0
      %v1739 = vadd.f32 %v1626, %v1738
      %v1740 = vpop.f32.mrb[0].mxu0
      %v1741 = vadd.f32 %v1628, %v1740
      %v1742 = vpop.f32.mrb[0].mxu0
      %v1743 = vadd.f32 %v1630, %v1742
      %v1744 = vpop.f32.mrb[0].mxu0
      %v1745 = vadd.f32 %v1632, %v1744
      %1746 = vmatprep.mubr.bf16.mxu0 %v1031
      %1747 = vmatmul.mubr.bf16.gmra.mrb[0].mxu0 %v1085
      %v1748 = vpop.f32.mrb[0].mxu0
      %v1749 = vadd.f32 %v1636, %v1748
      %v1750 = vpop.f32.mrb[0].mxu0
      %v1751 = vadd.f32 %v1638, %v1750
      %v1752 = vpop.f32.mrb[0].mxu0
      %v1753 = vadd.f32 %v1640, %v1752
      %v1754 = vpop.f32.mrb[0].mxu0
      %v1755 = vadd.f32 %v1642, %v1754
      %1756 = vmatprep.mubr.bf16.mxu0 %v1034
      %1757 = vmatmul.mubr.bf16.gmra.mrb[0].mxu0 %v1089
      %v1758 = vpop.f32.mrb[0].mxu0
      %v1759 = vadd.f32 %v1646, %v1758
      %v1760 = vpop.f32.mrb[0].mxu0
      %v1761 = vadd.f32 %v1648, %v1760
      %v1762 = vpop.f32.mrb[0].mxu0
      %v1763 = vadd.f32 %v1650, %v1762
      %v1764 = vpop.f32.mrb[0].mxu0
      %v1765 = vadd.f32 %v1652, %v1764
      %1766 = vmatprep.mubr.bf16.mxu0 %v1037
      %1767 = vmatmul.mubr.bf16.gmra.mrb[0].mxu0 %v1093
      %v1768 = vpop.f32.mrb[0].mxu0
      %v1769 = vadd.f32 %v1656, %v1768
      %v1770 = vpop.f32.mrb[0].mxu0
      %v1771 = vadd.f32 %v1658, %v1770
      %v1772 = vpop.f32.mrb[0].mxu0
      %v1773 = vadd.f32 %v1660, %v1772
      %v1774 = vpop.f32.mrb[0].mxu0
      %v1775 = vadd.f32 %v1662, %v1774
      %1776 = vmatprep.mubr.bf16.mxu0 %v1104
      %1777 = vmatmul.mubr.bf16.gmra.mrb[0].mxu0 %v1097
      %v1778 = vpop.f32.mrb[0].mxu0
      %v1779 = vadd.f32 %v1666, %v1778
      %v1780 = vpop.f32.mrb[0].mxu0
      %v1781 = vadd.f32 %v1668, %v1780
      %v1782 = vpop.f32.mrb[0].mxu0
      %v1783 = vadd.f32 %v1670, %v1782
      %v1784 = vpop.f32.mrb[0].mxu0
      %v1785 = vadd.f32 %v1672, %v1784
      %1786 = vmatprep.mubr.bf16.mxu0 %v1107
      %1787 = vmatmul.mubr.bf16.gmra.mrb[0].mxu0 %v1101
      %v1788 = vpop.f32.mrb[0].mxu0
      %v1789 = vadd.f32 %v1676, %v1788
      %v1790 = vpop.f32.mrb[0].mxu0
      %v1791 = vadd.f32 %v1678, %v1790
      %v1792 = vpop.f32.mrb[0].mxu0
      %v1793 = vadd.f32 %v1680, %v1792
      %v1794 = vpop.f32.mrb[0].mxu0
      %v1795 = vadd.f32 %v1682, %v1794
      %1796 = vdwg.mxu0
      %1797 = vmatprep.subr.bf16.mxu0 %v1474
      %1798 = vmatpush1.bf16.msra.mxu0 %v1473
      %1799 = vmatprep.subr.bf16.mxu0 %v1476
      %1800 = vmatpush1.bf16.msra.mxu0 %v1475
      %1801 = vmatprep.subr.bf16.mxu0 %v1478
      %1802 = vmatpush1.bf16.msra.mxu0 %v1477
      %1803 = vmatprep.subr.bf16.mxu0 %v1480
      %1804 = vmatpush1.bf16.msra.mxu0 %v1479
      %1805 = vmatprep.subr.bf16.mxu0 0
      %1806 = vmatpush1.bf16.msra.mxu0 0
      %1807 = vmatprep.subr.bf16.mxu0 0
      %1808 = vmatpush1.bf16.msra.mxu0 0
      %1809 = vmatprep.subr.bf16.mxu0 0
      %1810 = vmatpush1.bf16.msra.mxu0 0
      %1811 = vmatprep.subr.bf16.mxu0 0
      %1812 = vmatpush1.bf16.msra.mxu0 0
      %1813 = vmatprep.subr.bf16.mxu0 0
      %1814 = vmatpush1.bf16.msra.mxu0 0
      %1815 = vmatprep.subr.bf16.mxu0 0
      %1816 = vmatpush1.bf16.msra.mxu0 0
      %1817 = vmatprep.subr.bf16.mxu0 0
      %1818 = vmatpush1.bf16.msra.mxu0 0
      %1819 = vmatprep.subr.bf16.mxu0 0
      %1820 = vmatpush1.bf16.msra.mxu0 0
      %1821 = vmatprep.subr.bf16.mxu0 0
      %1822 = vmatpush1.bf16.msra.mxu0 0
      %1823 = vmatprep.subr.bf16.mxu0 0
      %1824 = vmatpush1.bf16.msra.mxu0 0
      %1825 = vmatprep.subr.bf16.mxu0 0
      %1826 = vmatpush1.bf16.msra.mxu0 0
      %1827 = vmatprep.subr.bf16.mxu0 0
      %1828 = vmatpush1.bf16.msra.mxu0 0
      %1829 = vmatprep.mubr.bf16.mxu0 0
      %1830 = vmatmul.mubr.bf16.gmra.mrb[0].mxu0 %v1553
      %v1831 = vpop.f32.mrb[0].mxu0
      %v1832 = vadd.f32 %v1719, %v1831
      %v1833 = vpop.f32.mrb[0].mxu0
      %v1834 = vadd.f32 %v1721, %v1833
      %v1835 = vpop.f32.mrb[0].mxu0
      %v1836 = vadd.f32 %v1723, %v1835
      %v1837 = vpop.f32.mrb[0].mxu0
      %v1838 = vadd.f32 %v1725, %v1837
      %1839 = vmatprep.mubr.bf16.mxu0 0
      %1840 = vmatmul.mubr.bf16.gmra.mrb[0].mxu0 %v1555
      %v1841 = vpop.f32.mrb[0].mxu0
      %v1842 = vadd.f32 %v1729, %v1841
      %v1843 = vpop.f32.mrb[0].mxu0
      %v1844 = vadd.f32 %v1731, %v1843
      %v1845 = vpop.f32.mrb[0].mxu0
      %v1846 = vadd.f32 %v1733, %v1845
      %v1847 = vpop.f32.mrb[0].mxu0
      %v1848 = vadd.f32 %v1735, %v1847
      %1849 = vmatprep.mubr.bf16.mxu0 0
      %1850 = vmatmul.mubr.bf16.gmra.mrb[0].mxu0 %v1557
      %v1851 = vpop.f32.mrb[0].mxu0
      %v1852 = vadd.f32 %v1739, %v1851
      %v1853 = vpop.f32.mrb[0].mxu0
      %v1854 = vadd.f32 %v1741, %v1853
      %v1855 = vpop.f32.mrb[0].mxu0
      %v1856 = vadd.f32 %v1743, %v1855
      %v1857 = vpop.f32.mrb[0].mxu0
      %v1858 = vadd.f32 %v1745, %v1857
      %1859 = vmatprep.mubr.bf16.mxu0 0
      %1860 = vmatmul.mubr.bf16.gmra.mrb[0].mxu0 %v1559
      %v1861 = vpop.f32.mrb[0].mxu0
      %v1862 = vadd.f32 %v1749, %v1861
      %v1863 = vpop.f32.mrb[0].mxu0
      %v1864 = vadd.f32 %v1751, %v1863
      %v1865 = vpop.f32.mrb[0].mxu0
      %v1866 = vadd.f32 %v1753, %v1865
      %v1867 = vpop.f32.mrb[0].mxu0
      %v1868 = vadd.f32 %v1755, %v1867
      %1869 = vmatprep.mubr.bf16.mxu0 0
      %1870 = vmatmul.mubr.bf16.gmra.mrb[0].mxu0 %v1561
      %v1871 = vpop.f32.mrb[0].mxu0
      %v1872 = vadd.f32 %v1759, %v1871
      %v1873 = vpop.f32.mrb[0].mxu0
      %v1874 = vadd.f32 %v1761, %v1873
      %v1875 = vpop.f32.mrb[0].mxu0
      %v1876 = vadd.f32 %v1763, %v1875
      %v1877 = vpop.f32.mrb[0].mxu0
      %v1878 = vadd.f32 %v1765, %v1877
      %1879 = vmatprep.mubr.bf16.mxu0 0
      %1880 = vmatmul.mubr.bf16.gmra.mrb[0].mxu0 %v1563
      %v1881 = vpop.f32.mrb[0].mxu0
      %v1882 = vadd.f32 %v1769, %v1881
      %v1883 = vpop.f32.mrb[0].mxu0
      %v1884 = vadd.f32 %v1771, %v1883
      %v1885 = vpop.f32.mrb[0].mxu0
      %v1886 = vadd.f32 %v1773, %v1885
      %v1887 = vpop.f32.mrb[0].mxu0
      %v1888 = vadd.f32 %v1775, %v1887
      %1889 = vmatprep.mubr.bf16.mxu0 0
      %1890 = vmatmul.mubr.bf16.gmra.mrb[0].mxu0 %v1566
      %v1891 = vpop.f32.mrb[0].mxu0
      %v1892 = vadd.f32 %v1779, %v1891
      %v1893 = vpop.f32.mrb[0].mxu0
      %v1894 = vadd.f32 %v1781, %v1893
      %v1895 = vpop.f32.mrb[0].mxu0
      %v1896 = vadd.f32 %v1783, %v1895
      %v1897 = vpop.f32.mrb[0].mxu0
      %v1898 = vadd.f32 %v1785, %v1897
      %1899 = vmatprep.mubr.bf16.mxu0 0
      %1900 = vmatmul.mubr.bf16.gmra.mrb[0].mxu0 %v1569
      %v1901 = vpop.f32.mrb[0].mxu0
      %v1902 = vadd.f32 %v1789, %v1901
      %v1903 = vpop.f32.mrb[0].mxu0
      %v1904 = vadd.f32 %v1791, %v1903
      %v1905 = vpop.f32.mrb[0].mxu0
      %v1906 = vadd.f32 %v1793, %v1905
      %v1907 = vpop.f32.mrb[0].mxu0
      %v1908 = vadd.f32 %v1795, %v1907
      %1909 = vdwg.mxu0
      %1910 = vst [vmem:[%s333] sm:$0xff] %v1832
      %1911 = vst [vmem:[%s333 + $0x8] sm:$0xff] %v1836
      %1912 = vst [vmem:[%s333 + $0x20] sm:$0xff] %v1842
      %1913 = vst [vmem:[%s333 + $0x28] sm:$0xff] %v1846
      %1914 = vst [vmem:[%s333 + $0x40] sm:$0xff] %v1852
      %1915 = vst [vmem:[%s333 + $0x48] sm:$0xff] %v1856
      %1916 = vst [vmem:[%s333 + $0x60] sm:$0xff] %v1862
      %1917 = vst [vmem:[%s333 + $0x68] sm:$0xff] %v1866
      %1918 = vst [vmem:[%s333 + $0x80] sm:$0xff] %v1872
      %1919 = vst [vmem:[%s333 + $0x88] sm:$0xff] %v1876
      %1920 = vst [vmem:[%s333 + $0xa0] sm:$0xff] %v1882
      %1921 = vst [vmem:[%s333 + $0xa8] sm:$0xff] %v1886
      %1922 = vst [vmem:[%s333 + $0xc0] sm:$0xff] %v1892
      %1923 = vst [vmem:[%s333 + $0xc8] sm:$0xff] %v1896
      %1924 = vst [vmem:[%s333 + $0xe0] sm:$0xff] %v1902
      %1925 = vst [vmem:[%s333 + $0xe8] sm:$0xff] %v1906
      %s1926 = scalar_lea.vmem %s333, 16
      %1927 = vst [vmem:[%s1926] sm:$0xff] %v1834
      %1928 = vst [vmem:[%s1926 + $0x8] sm:$0xff] %v1838
      %1929 = vst [vmem:[%s1926 + $0x20] sm:$0xff] %v1844
      %1930 = vst [vmem:[%s1926 + $0x28] sm:$0xff] %v1848
      %1931 = vst [vmem:[%s1926 + $0x40] sm:$0xff] %v1854
      %1932 = vst [vmem:[%s1926 + $0x48] sm:$0xff] %v1858
      %1933 = vst [vmem:[%s1926 + $0x60] sm:$0xff] %v1864
      %1934 = vst [vmem:[%s1926 + $0x68] sm:$0xff] %v1868
      %1935 = vst [vmem:[%s1926 + $0x80] sm:$0xff] %v1874
      %1936 = vst [vmem:[%s1926 + $0x88] sm:$0xff] %v1878
      %1937 = vst [vmem:[%s1926 + $0xa0] sm:$0xff] %v1884
      %1938 = vst [vmem:[%s1926 + $0xa8] sm:$0xff] %v1888
      %1939 = vst [vmem:[%s1926 + $0xc0] sm:$0xff] %v1894
      %1940 = vst [vmem:[%s1926 + $0xc8] sm:$0xff] %v1898
      %1941 = vst [vmem:[%s1926 + $0xe0] sm:$0xff] %v1904
      %1942 = vst [vmem:[%s1926 + $0xe8] sm:$0xff] %v1908
      %s1943 = smul.u32 %s20, 2
      %s1944 = sadd.s32 %s1943, %s21
      %s1945 = smul.u32 8, %s1944
      %p1946 = scmp.lt.s32.totalorder %s1945, 31
      %s1947 = scalar_select %p1946, %s1945, 31
      %s1948 = smul.addr %s1947, 4
      %s1949 = smul.addr %s1948, 8
      %s1950 = scalar_lea.vmem %s5, %s1949
      // Predicated region
      $region41: #{upsample.1} parent=39 // pred_check
        %p1951 = pneg %p176
      $region42: #{upsample.1} parent=39 // pred_check_branch
        %1953 = sbr.rel (%p1951) target = $region44
      $region43: #{upsample.1} parent=39 // pred_region
        %s1954 = smul.u32 %s20, 2
        %s1955 = sadd.s32 %s1954, %s21
        %s1956 = smul.u32 8, %s1955
      $region44: #{upsample.1} parent=39 // pred_fallthru
        _
    $region40: #{upsample.1} parent=5 // pred_fallthru
      _
    %p1957 = scmp.le.s32.totalorder 2, %s11
    // Predicated region
    $region45: #{upsample.1} parent=5 // pred_check
      %p1958 = pneg %p1957
    $region46: #{upsample.1} parent=5 // pred_check_branch
      %1960 = sbr.rel (%p1958) target = $region48
    $region47: #{upsample.1} parent=5 // pred_region
      %s1961 = ssub.s32 %s11, 2
      // Predicated region
      $region49: #{upsample.1} parent=47 // pred_check
        %p1962 = pneg %p182
      $region50: #{upsample.1} parent=47 // pred_check_branch
        %1964 = sbr.rel (%p1962) target = $region52
      $region51: #{upsample.1} parent=47 // pred_region
        %s1965 = smul.u32 %s22, 2
        %s1966 = sadd.s32 %s1965, %s23
        %s1967 = smul.u32 8, %s1966
        %p1968 = scmp.lt.s32.totalorder %s1967, 31
        %s1969 = scalar_select %p1968, %s1967, 31
        %s1970 = smul.addr %s1969, 4
        %s1971 = smul.addr %s1970, 8
        %s1972 = scalar_lea.vmem %s5, %s1971
      $region52: #{upsample.1} parent=47 // pred_fallthru
        _
    $region48: #{upsample.1} parent=5 // pred_fallthru
      _
  $region6: #{upsample.1} parent=0 // loop_footer
    %s15 = sadd.s32 1, %s11
  $region7: #{upsample.1} parent=0 // loop_footer_branch
    %10 = sbr.rel target = $region3
  $region8: #{upsample.1} parent=0 // loop_exit
    _

</llo_original>
